<compile_context>
chip_gen: v7x
topology: tpu7x:2x2x1
jax: 0.10.0
libtpu: 0.0.40
codegen_flags: <defaults>
</compile_context>

<pallas_src>
import jax
import jax.numpy as jnp
from jax.experimental import pallas as pl
from jax.experimental.pallas import tpu as pltpu


# ----------------------------- kernel helpers ------------------------------

def _maxpool2(h):
    """MaxPool1d(kernel=2, stride=2) along axis 1 of (Bblk, L, C)."""
    Bb, Lh, C = h.shape
    hr = h.reshape(Bb, Lh // 2, 2, C)
    return jnp.maximum(hr[:, :, 0, :], hr[:, :, 1, :])


def _conv_relu(h, w, b):
    """Conv1d(k=3, stride=1, pad=1) + bias + ReLU, batched over samples.

    h: (Bblk, L, Cin) f32
    w: (3*Cin, Cout), row index = k*Cin + ci (im2col order)
    b: (1, Cout) f32
    """
    Bb, Lh, Cin = h.shape
    Cout = w.shape[1]
    z = jnp.zeros((Bb, 1, Cin), h.dtype)
    hp = jnp.concatenate([z, h, z], axis=1)                      # (Bblk, L+2, Cin)
    cols = jnp.concatenate([hp[:, k:k + Lh, :] for k in range(3)],
                           axis=-1)                              # (Bblk, L, 3*Cin)
    a = cols.reshape(Bb * Lh, 3 * Cin).astype(w.dtype)           # bf16 for conv2/3
    y = jnp.dot(a, w, preferred_element_type=jnp.float32)        # one MXU matmul
    return jnp.maximum(y.reshape(Bb, Lh, Cout) + b, 0.0)


# --------------------------------- kernel ----------------------------------

def conv_simple_nn_kernel(x_ref, w1_ref, b1_ref, w2_ref, b2_ref,
                          w3_ref, b3_ref, wf_ref, bf_ref, o_ref):
    x = x_ref[...]                                               # (Bblk, L) f32
    Bb, L = x.shape

    h = _conv_relu(x.reshape(Bb, L, 1), w1_ref[...], b1_ref[...])   # (Bblk, L, 64)
    h = _maxpool2(h)                                                # (Bblk, L/2, 64)
    h = _conv_relu(h, w2_ref[...], b2_ref[...])                     # (Bblk, L/2, 128)
    h = _maxpool2(h)                                                # (Bblk, L/4, 128)
    h = _conv_relu(h, w3_ref[...], b3_ref[...])                     # (Bblk, L/4, 256)

    # FC: one contraction over L/4*256 (wf pre-permuted so the (L/4, 256)
    # flatten matches torch's channel-major flatten).
    wf = wf_ref[...]
    hf = h.reshape(Bb, -1).astype(wf.dtype)                         # (Bblk, L/4*256)
    logits = jnp.dot(hf, wf, preferred_element_type=jnp.float32) + bf_ref[...]

    # softmax over the class axis (f32).
    m = jnp.max(logits, axis=-1, keepdims=True)
    e = jnp.exp(logits - m)
    o_ref[...] = (e / jnp.sum(e, axis=-1, keepdims=True)).astype(o_ref.dtype)


# --------------------------------- wrapper ---------------------------------

def conv_simple_nn(x, params, block_b=64):
    """x: (B, L) float32; params are PyTorch-convention weights/biases."""
    w1, b1, w2, b2, w3, b3, wf, bf = params
    B, L = x.shape
    assert L % 4 == 0
    L4 = L // 4

    # Batch blocking: Bblk samples per grid step; pad B to a multiple of Bblk.
    Bblk = block_b if B >= block_b else B
    n_blocks = -(-B // Bblk)
    Bpad = n_blocks * Bblk
    x_k = x.astype(jnp.float32)
    if Bpad != B:
        x_k = jnp.concatenate(
            [x_k, jnp.zeros((Bpad - B, L), jnp.float32)], axis=0)

    # Weight layout: (Cout, Cin, 3) -> (3*Cin, Cout), row = k*Cin + ci, matching
    # the kernel's im2col column order.  conv2/conv3/fc weights in bf16
    # (MXU-native); conv1 (K=3, trivial work) stays f32.
    w1_k = jnp.transpose(w1, (2, 1, 0)).reshape(3 * 1, 64).astype(jnp.float32)
    w2_k = jnp.transpose(w2, (2, 1, 0)).reshape(3 * 64, 128).astype(jnp.bfloat16)
    w3_k = jnp.transpose(w3, (2, 1, 0)).reshape(3 * 128, 256).astype(jnp.bfloat16)
    # fc: torch flattens (B, 256, L4) channel-major; permute so wf row l*256+c
    # matches the kernel's (L4, 256) position-major flatten.
    wf_k = (jnp.transpose(wf.reshape(2, 256, L4), (2, 1, 0))
               .reshape(L4 * 256, 2).astype(jnp.bfloat16))
    b1_k, b2_k, b3_k, bf_k = (b[None, :].astype(jnp.float32)
                              for b in (b1, b2, b3, bf))

    def full(shape):
        n = len(shape)
        return pl.BlockSpec(tuple(shape), lambda i, _n=n: (0,) * _n)

    out = pl.pallas_call(
        conv_simple_nn_kernel,
        out_shape=jax.ShapeDtypeStruct((Bpad, 2), jnp.float32),
        grid=(n_blocks,),
        in_specs=[
            pl.BlockSpec((Bblk, L), lambda i: (i, 0)),   # lane-dense input tile
            full(w1_k.shape), full(b1_k.shape),
            full(w2_k.shape), full(b2_k.shape),
            full(w3_k.shape), full(b3_k.shape),
            full(wf_k.shape), full(bf_k.shape),
        ],
        out_specs=pl.BlockSpec((Bblk, 2), lambda i: (i, 0)),
        compiler_params=pltpu.CompilerParams(
            dimension_semantics=("parallel",)),
        # VMEM footprint is ~2 MiB even at Bblk=64, well under the 32 MiB
        # scoped default on all generations (incl. v7x's 64 MiB physical),
        # so no vmem_limit_bytes override is needed.
    )(x_k, w1_k, b1_k, w2_k, b2_k, w3_k, b3_k, wf_k, bf_k)
    return out[:B]                                               # (B, 2)


# ----------------------- deterministic parameter init ----------------------

def init_params(key, input_size):
    def uni(k, shape, fan_in):
        bound = 1.0 / (fan_in ** 0.5)
        return jax.random.uniform(k, shape, jnp.float32, -bound, bound)

    ks = jax.random.split(key, 8)
    w1 = uni(ks[0], (64, 1, 3), 1 * 3)
    b1 = uni(ks[1], (64,), 1 * 3)
    w2 = uni(ks[2], (128, 64, 3), 64 * 3)
    b2 = uni(ks[3], (128,), 64 * 3)
    w3 = uni(ks[4], (256, 128, 3), 128 * 3)
    b3 = uni(ks[5], (256,), 128 * 3)
    fc_in = 256 * (input_size // 4)
    wf = uni(ks[6], (2, fc_in), fc_in)
    bf = uni(ks[7], (2,), fc_in)
    return (w1, b1, w2, b2, w3, b3, wf, bf)


# ------------------------- pure-JAX reference check ------------------------

def reference_forward(x, params):
    w1, b1, w2, b2, w3, b3, wf, bf = params

    def conv1d(h, w, b):
        y = jax.lax.conv_general_dilated(
            h, w, window_strides=(1,), padding=((1, 1),),
            dimension_numbers=("NCH", "OIH", "NCH"),
            precision=jax.lax.Precision.HIGHEST)
        return y + b[None, :, None]

    def maxpool(h):
        return jax.lax.reduce_window(h, -jnp.inf, jax.lax.max,
                                     (1, 1, 2), (1, 1, 2), "VALID")

    h = x[:, None, :]                                        # (B, 1, L)
    h = maxpool(jax.nn.relu(conv1d(h, w1, b1)))
    h = maxpool(jax.nn.relu(conv1d(h, w2, b2)))
    h = jax.nn.relu(conv1d(h, w3, b3))
    h = h.reshape(h.shape[0], -1)                            # channel-major flatten
    logits = jnp.dot(h, wf.T, precision=jax.lax.Precision.HIGHEST) + bf
    return jax.nn.softmax(logits, axis=1)


# ----------------------------------- main -----------------------------------

if __name__ == "__main__":
    B, input_size = 2, 16                                    # input_size % 4 == 0
    key = jax.random.PRNGKey(0)
    pkey, xkey = jax.random.split(key)
    params = init_params(pkey, input_size)
    x = jax.random.normal(xkey, (B, input_size), jnp.float32)

    out = jax.block_until_ready(conv_simple_nn(x, params))
    ref = jax.block_until_ready(reference_forward(x, params))

    assert out.shape == (B, 2), out.shape
    assert bool(jnp.all(jnp.isfinite(out)))
    assert bool(jnp.allclose(jnp.sum(out, axis=1), 1.0, atol=1e-5))
    # bf16 matmul operands with f32 accumulation vs. full-f32 reference.
    assert bool(jnp.allclose(out, ref, atol=1e-2, rtol=1e-2)), (out, ref)

    # Multi-block grid path (batch blocking + tail padding) sanity check.
    x2 = jax.random.normal(jax.random.PRNGKey(1), (13, input_size), jnp.float32)
    out2 = jax.block_until_ready(conv_simple_nn(x2, params, block_b=8))
    ref2 = reference_forward(x2, params)
    assert out2.shape == (13, 2), out2.shape
    assert bool(jnp.allclose(jnp.sum(out2, axis=1), 1.0, atol=1e-5))
    assert bool(jnp.allclose(out2, ref2, atol=1e-2, rtol=1e-2)), (out2, ref2)

    print("KERNEL_OK")
</pallas_src>

<mosaic_0001>
module attributes {stable_mosaic.version = 11 : i64} {
  func.func @conv_simple_nn_kernel(%arg0: i32, %arg1: memref<2x16xf32, #tpu.memory_space<vmem>>, %arg2: memref<3x64xf32, #tpu.memory_space<vmem>>, %arg3: memref<1x64xf32, #tpu.memory_space<vmem>>, %arg4: memref<192x128xbf16, #tpu.memory_space<vmem>>, %arg5: memref<1x128xf32, #tpu.memory_space<vmem>>, %arg6: memref<384x256xbf16, #tpu.memory_space<vmem>>, %arg7: memref<1x256xf32, #tpu.memory_space<vmem>>, %arg8: memref<1024x2xbf16, #tpu.memory_space<vmem>>, %arg9: memref<1x2xf32, #tpu.memory_space<vmem>>, %arg10: memref<2x2xf32, #tpu.memory_space<vmem>>) attributes {dimension_semantics = [#tpu.dimension_semantics<parallel>], iteration_bounds = array<i64: 1>, scalar_prefetch = 0 : i64, scratch_operands = 0 : i64, tpu.core_type = #tpu.core_type<tc>, window_params = [{transform_indices = @transform_0, window_bounds = array<i64: 2, 16>}, {pipeline_mode = #tpu.pipeline_mode<synchronous>, transform_indices = @transform_1, window_bounds = array<i64: 3, 64>}, {pipeline_mode = #tpu.pipeline_mode<synchronous>, transform_indices = @transform_2, window_bounds = array<i64: 1, 64>}, {pipeline_mode = #tpu.pipeline_mode<synchronous>, transform_indices = @transform_3, window_bounds = array<i64: 192, 128>}, {pipeline_mode = #tpu.pipeline_mode<synchronous>, transform_indices = @transform_4, window_bounds = array<i64: 1, 128>}, {pipeline_mode = #tpu.pipeline_mode<synchronous>, transform_indices = @transform_5, window_bounds = array<i64: 384, 256>}, {pipeline_mode = #tpu.pipeline_mode<synchronous>, transform_indices = @transform_6, window_bounds = array<i64: 1, 256>}, {pipeline_mode = #tpu.pipeline_mode<synchronous>, transform_indices = @transform_7, window_bounds = array<i64: 1024, 2>}, {pipeline_mode = #tpu.pipeline_mode<synchronous>, transform_indices = @transform_8, window_bounds = array<i64: 1, 2>}, {transform_indices = @transform_9, window_bounds = array<i64: 2, 2>}]} {
    %c0 = arith.constant 0 : index
    %c0_0 = arith.constant 0 : index
    %0 = vector.load %arg1[%c0, %c0_0] : memref<2x16xf32, #tpu.memory_space<vmem>>, vector<2x16xf32>
    %1 = vector.shape_cast %0 : vector<2x16xf32> to vector<2x16x1xf32>
    %c0_1 = arith.constant 0 : index
    %c0_2 = arith.constant 0 : index
    %2 = vector.load %arg2[%c0_1, %c0_2] : memref<3x64xf32, #tpu.memory_space<vmem>>, vector<3x64xf32>
    %c0_3 = arith.constant 0 : index
    %c0_4 = arith.constant 0 : index
    %3 = vector.load %arg3[%c0_3, %c0_4] : memref<1x64xf32, #tpu.memory_space<vmem>>, vector<1x64xf32>
    %cst = arith.constant 0.000000e+00 : f32
    %4 = vector.broadcast %cst : f32 to vector<2x1x1xf32>
    %5 = tpu.concatenate %4, %1, %4 in 1 : vector<2x1x1xf32>, vector<2x16x1xf32>, vector<2x1x1xf32> -> vector<2x18x1xf32>
    %6 = vector.extract_strided_slice %5 {offsets = [0, 0, 0], sizes = [2, 16, 1], strides = [1, 1, 1]} : vector<2x18x1xf32> to vector<2x16x1xf32>
    %7 = vector.extract_strided_slice %5 {offsets = [0, 1, 0], sizes = [2, 16, 1], strides = [1, 1, 1]} : vector<2x18x1xf32> to vector<2x16x1xf32>
    %8 = vector.extract_strided_slice %5 {offsets = [0, 2, 0], sizes = [2, 16, 1], strides = [1, 1, 1]} : vector<2x18x1xf32> to vector<2x16x1xf32>
    %9 = tpu.concatenate %6, %7, %8 in 2 : vector<2x16x1xf32>, vector<2x16x1xf32>, vector<2x16x1xf32> -> vector<2x16x3xf32>
    %10 = vector.shape_cast %9 : vector<2x16x3xf32> to vector<32x3xf32>
    %cst_5 = arith.constant dense<0.000000e+00> : vector<32x64xf32>
    %11 = tpu.matmul %10, %2, %cst_5 {dimension_numbers = #tpu.dot_dimension_numbers<[1], [0], [0], [1], [0, 0, 1, 1], [], []>} : vector<32x3xf32>, vector<3x64xf32>, vector<32x64xf32> -> vector<32x64xf32>
    %12 = vector.shape_cast %11 : vector<32x64xf32> to vector<2x16x64xf32>
    %13 = vector.shape_cast %3 : vector<1x64xf32> to vector<1x1x64xf32>
    %14 = vector.broadcast %13 : vector<1x1x64xf32> to vector<2x16x64xf32>
    %15 = arith.addf %12, %14 : vector<2x16x64xf32>
    %cst_6 = arith.constant 0.000000e+00 : f32
    %16 = vector.broadcast %cst_6 : f32 to vector<2x16x64xf32>
    %17 = arith.maximumf %15, %16 : vector<2x16x64xf32>
    %18 = vector.shape_cast %17 : vector<2x16x64xf32> to vector<2x8x2x64xf32>
    %19 = vector.extract_strided_slice %18 {offsets = [0, 0, 0, 0], sizes = [2, 8, 1, 64], strides = [1, 1, 1, 1]} : vector<2x8x2x64xf32> to vector<2x8x1x64xf32>
    %20 = vector.shape_cast %19 : vector<2x8x1x64xf32> to vector<2x8x64xf32>
    %21 = vector.extract_strided_slice %18 {offsets = [0, 0, 1, 0], sizes = [2, 8, 1, 64], strides = [1, 1, 1, 1]} : vector<2x8x2x64xf32> to vector<2x8x1x64xf32>
    %22 = vector.shape_cast %21 : vector<2x8x1x64xf32> to vector<2x8x64xf32>
    %23 = arith.maximumf %20, %22 : vector<2x8x64xf32>
    %c0_7 = arith.constant 0 : index
    %c0_8 = arith.constant 0 : index
    %24 = vector.load %arg4[%c0_7, %c0_8] : memref<192x128xbf16, #tpu.memory_space<vmem>>, vector<192x128xbf16>
    %c0_9 = arith.constant 0 : index
    %c0_10 = arith.constant 0 : index
    %25 = vector.load %arg5[%c0_9, %c0_10] : memref<1x128xf32, #tpu.memory_space<vmem>>, vector<1x128xf32>
    %cst_11 = arith.constant 0.000000e+00 : f32
    %26 = vector.broadcast %cst_11 : f32 to vector<2x1x64xf32>
    %27 = tpu.concatenate %26, %23, %26 in 1 : vector<2x1x64xf32>, vector<2x8x64xf32>, vector<2x1x64xf32> -> vector<2x10x64xf32>
    %28 = vector.extract_strided_slice %27 {offsets = [0, 0, 0], sizes = [2, 8, 64], strides = [1, 1, 1]} : vector<2x10x64xf32> to vector<2x8x64xf32>
    %29 = vector.extract_strided_slice %27 {offsets = [0, 1, 0], sizes = [2, 8, 64], strides = [1, 1, 1]} : vector<2x10x64xf32> to vector<2x8x64xf32>
    %30 = vector.extract_strided_slice %27 {offsets = [0, 2, 0], sizes = [2, 8, 64], strides = [1, 1, 1]} : vector<2x10x64xf32> to vector<2x8x64xf32>
    %31 = tpu.concatenate %28, %29, %30 in 2 : vector<2x8x64xf32>, vector<2x8x64xf32>, vector<2x8x64xf32> -> vector<2x8x192xf32>
    %32 = vector.shape_cast %31 : vector<2x8x192xf32> to vector<16x192xf32>
    %33 = arith.truncf %32 : vector<16x192xf32> to vector<16x192xbf16>
    %cst_12 = arith.constant dense<0.000000e+00> : vector<16x128xf32>
    %34 = tpu.matmul %33, %24, %cst_12 {dimension_numbers = #tpu.dot_dimension_numbers<[1], [0], [0], [1], [0, 0, 1, 1], [], []>} : vector<16x192xbf16>, vector<192x128xbf16>, vector<16x128xf32> -> vector<16x128xf32>
    %35 = vector.shape_cast %34 : vector<16x128xf32> to vector<2x8x128xf32>
    %36 = vector.shape_cast %25 : vector<1x128xf32> to vector<1x1x128xf32>
    %37 = vector.broadcast %36 : vector<1x1x128xf32> to vector<2x8x128xf32>
    %38 = arith.addf %35, %37 : vector<2x8x128xf32>
    %cst_13 = arith.constant 0.000000e+00 : f32
    %39 = vector.broadcast %cst_13 : f32 to vector<2x8x128xf32>
    %40 = arith.maximumf %38, %39 : vector<2x8x128xf32>
    %41 = vector.shape_cast %40 : vector<2x8x128xf32> to vector<2x4x2x128xf32>
    %42 = vector.extract_strided_slice %41 {offsets = [0, 0, 0, 0], sizes = [2, 4, 1, 128], strides = [1, 1, 1, 1]} : vector<2x4x2x128xf32> to vector<2x4x1x128xf32>
    %43 = vector.shape_cast %42 : vector<2x4x1x128xf32> to vector<2x4x128xf32>
    %44 = vector.extract_strided_slice %41 {offsets = [0, 0, 1, 0], sizes = [2, 4, 1, 128], strides = [1, 1, 1, 1]} : vector<2x4x2x128xf32> to vector<2x4x1x128xf32>
    %45 = vector.shape_cast %44 : vector<2x4x1x128xf32> to vector<2x4x128xf32>
    %46 = arith.maximumf %43, %45 : vector<2x4x128xf32>
    %c0_14 = arith.constant 0 : index
    %c0_15 = arith.constant 0 : index
    %47 = vector.load %arg6[%c0_14, %c0_15] : memref<384x256xbf16, #tpu.memory_space<vmem>>, vector<384x256xbf16>
    %c0_16 = arith.constant 0 : index
    %c0_17 = arith.constant 0 : index
    %48 = vector.load %arg7[%c0_16, %c0_17] : memref<1x256xf32, #tpu.memory_space<vmem>>, vector<1x256xf32>
    %cst_18 = arith.constant 0.000000e+00 : f32
    %49 = vector.broadcast %cst_18 : f32 to vector<2x1x128xf32>
    %50 = tpu.concatenate %49, %46, %49 in 1 : vector<2x1x128xf32>, vector<2x4x128xf32>, vector<2x1x128xf32> -> vector<2x6x128xf32>
    %51 = vector.extract_strided_slice %50 {offsets = [0, 0, 0], sizes = [2, 4, 128], strides = [1, 1, 1]} : vector<2x6x128xf32> to vector<2x4x128xf32>
    %52 = vector.extract_strided_slice %50 {offsets = [0, 1, 0], sizes = [2, 4, 128], strides = [1, 1, 1]} : vector<2x6x128xf32> to vector<2x4x128xf32>
    %53 = vector.extract_strided_slice %50 {offsets = [0, 2, 0], sizes = [2, 4, 128], strides = [1, 1, 1]} : vector<2x6x128xf32> to vector<2x4x128xf32>
    %54 = tpu.concatenate %51, %52, %53 in 2 : vector<2x4x128xf32>, vector<2x4x128xf32>, vector<2x4x128xf32> -> vector<2x4x384xf32>
    %55 = vector.shape_cast %54 : vector<2x4x384xf32> to vector<8x384xf32>
    %56 = arith.truncf %55 : vector<8x384xf32> to vector<8x384xbf16>
    %cst_19 = arith.constant dense<0.000000e+00> : vector<8x256xf32>
    %57 = tpu.matmul %56, %47, %cst_19 {dimension_numbers = #tpu.dot_dimension_numbers<[1], [0], [0], [1], [0, 0, 1, 1], [], []>} : vector<8x384xbf16>, vector<384x256xbf16>, vector<8x256xf32> -> vector<8x256xf32>
    %58 = vector.shape_cast %57 : vector<8x256xf32> to vector<2x4x256xf32>
    %59 = vector.shape_cast %48 : vector<1x256xf32> to vector<1x1x256xf32>
    %60 = vector.broadcast %59 : vector<1x1x256xf32> to vector<2x4x256xf32>
    %61 = arith.addf %58, %60 : vector<2x4x256xf32>
    %cst_20 = arith.constant 0.000000e+00 : f32
    %62 = vector.broadcast %cst_20 : f32 to vector<2x4x256xf32>
    %63 = arith.maximumf %61, %62 : vector<2x4x256xf32>
    %c0_21 = arith.constant 0 : index
    %c0_22 = arith.constant 0 : index
    %64 = vector.load %arg8[%c0_21, %c0_22] : memref<1024x2xbf16, #tpu.memory_space<vmem>>, vector<1024x2xbf16>
    %65 = vector.shape_cast %63 : vector<2x4x256xf32> to vector<2x1024xf32>
    %66 = arith.truncf %65 : vector<2x1024xf32> to vector<2x1024xbf16>
    %cst_23 = arith.constant dense<0.000000e+00> : vector<2x2xf32>
    %67 = tpu.matmul %66, %64, %cst_23 {dimension_numbers = #tpu.dot_dimension_numbers<[1], [0], [0], [1], [0, 0, 1, 1], [], []>} : vector<2x1024xbf16>, vector<1024x2xbf16>, vector<2x2xf32> -> vector<2x2xf32>
    %c0_24 = arith.constant 0 : index
    %c0_25 = arith.constant 0 : index
    %68 = vector.load %arg9[%c0_24, %c0_25] : memref<1x2xf32, #tpu.memory_space<vmem>>, vector<1x2xf32>
    %69 = vector.broadcast %68 : vector<1x2xf32> to vector<2x2xf32>
    %70 = arith.addf %67, %69 : vector<2x2xf32>
    %cst_26 = arith.constant dense<0xFF800000> : vector<2xf32>
    %71 = vector.multi_reduction <maximumf>, %70, %cst_26 [1] : vector<2x2xf32> to vector<2xf32>
    %72 = vector.shape_cast %71 : vector<2xf32> to vector<2x1xf32>
    %73 = vector.broadcast %72 : vector<2x1xf32> to vector<2x2xf32>
    %74 = arith.subf %70, %73 : vector<2x2xf32>
    %75 = math.exp %74 : vector<2x2xf32>
    %cst_27 = arith.constant dense<0.000000e+00> : vector<2xf32>
    %76 = vector.multi_reduction <add>, %75, %cst_27 [1] : vector<2x2xf32> to vector<2xf32>
    %77 = vector.shape_cast %76 : vector<2xf32> to vector<2x1xf32>
    %78 = vector.broadcast %77 : vector<2x1xf32> to vector<2x2xf32>
    %79 = arith.divf %75, %78 : vector<2x2xf32>
    %c0_28 = arith.constant 0 : index
    %c0_29 = arith.constant 0 : index
    %80 = vector.load %arg10[%c0_28, %c0_29] : memref<2x2xf32, #tpu.memory_space<vmem>>, vector<2x2xf32>
    tpu.vector_store %arg10[%c0_28, %c0_29], %79 {strides = array<i32>} : memref<2x2xf32, #tpu.memory_space<vmem>>, vector<2x2xf32>,
    return
  }
  func.func @transform_0(%arg0: i32) -> (i32, i32) {
    %c0_i32 = arith.constant 0 : i32
    %c0_i32_0 = arith.constant 0 : i32
    return %arg0, %c0_i32 : i32, i32
  }
  func.func @transform_1(%arg0: i32) -> (i32, i32) {
    %c0_i32 = arith.constant 0 : i32
    %c0_i32_0 = arith.constant 0 : i32
    %c0_i32_1 = arith.constant 0 : i32
    return %c0_i32, %c0_i32_0 : i32, i32
  }
  func.func @transform_2(%arg0: i32) -> (i32, i32) {
    %c0_i32 = arith.constant 0 : i32
    %c0_i32_0 = arith.constant 0 : i32
    %c0_i32_1 = arith.constant 0 : i32
    return %c0_i32, %c0_i32_0 : i32, i32
  }
  func.func @transform_3(%arg0: i32) -> (i32, i32) {
    %c0_i32 = arith.constant 0 : i32
    %c0_i32_0 = arith.constant 0 : i32
    %c0_i32_1 = arith.constant 0 : i32
    return %c0_i32, %c0_i32_0 : i32, i32
  }
  func.func @transform_4(%arg0: i32) -> (i32, i32) {
    %c0_i32 = arith.constant 0 : i32
    %c0_i32_0 = arith.constant 0 : i32
    %c0_i32_1 = arith.constant 0 : i32
    return %c0_i32, %c0_i32_0 : i32, i32
  }
  func.func @transform_5(%arg0: i32) -> (i32, i32) {
    %c0_i32 = arith.constant 0 : i32
    %c0_i32_0 = arith.constant 0 : i32
    %c0_i32_1 = arith.constant 0 : i32
    return %c0_i32, %c0_i32_0 : i32, i32
  }
  func.func @transform_6(%arg0: i32) -> (i32, i32) {
    %c0_i32 = arith.constant 0 : i32
    %c0_i32_0 = arith.constant 0 : i32
    %c0_i32_1 = arith.constant 0 : i32
    return %c0_i32, %c0_i32_0 : i32, i32
  }
  func.func @transform_7(%arg0: i32) -> (i32, i32) {
    %c0_i32 = arith.constant 0 : i32
    %c0_i32_0 = arith.constant 0 : i32
    %c0_i32_1 = arith.constant 0 : i32
    return %c0_i32, %c0_i32_0 : i32, i32
  }
  func.func @transform_8(%arg0: i32) -> (i32, i32) {
    %c0_i32 = arith.constant 0 : i32
    %c0_i32_0 = arith.constant 0 : i32
    %c0_i32_1 = arith.constant 0 : i32
    return %c0_i32, %c0_i32_0 : i32, i32
  }
  func.func @transform_9(%arg0: i32) -> (i32, i32) {
    %c0_i32 = arith.constant 0 : i32
    %c0_i32_0 = arith.constant 0 : i32
    return %arg0, %c0_i32 : i32, i32
  }
}

</mosaic_0001>

<llo_original>
// kernel: tpu_custom_call.1
$region0: #{tpu_custom_call.1}
  #allocation0 [shape = 'u32[]', space=smem, size = 0x4, offset = 0x4, fixed_abs, tag = 'smem constant byte address 0x4 - core index']
  #allocation1 [shape = 'u32[144,128]{1,0:T(1,128)}', space=vmem, size = 0x12000, scoped, tag = 'internal scratch']
  %s0 = inlined_call_operand.vmem [shape: f32[2,16], index: 0, kind: input, shape index: {}]
  %s1 = inlined_call_operand.vmem [shape: f32[3,64], index: 1, kind: input, shape index: {}]
  %s2 = inlined_call_operand.vmem [shape: f32[1,64], index: 2, kind: input, shape index: {}]
  %s3 = inlined_call_operand.vmem [shape: bf16[192,128], index: 3, kind: input, shape index: {}]
  %s4 = inlined_call_operand.vmem [shape: f32[1,128], index: 4, kind: input, shape index: {}]
  %s5 = inlined_call_operand.vmem [shape: bf16[384,256], index: 5, kind: input, shape index: {}]
  %s6 = inlined_call_operand.vmem [shape: f32[1,256], index: 6, kind: input, shape index: {}]
  %s7 = inlined_call_operand.vmem [shape: bf16[1024,2], index: 7, kind: input, shape index: {}]
  %s8 = inlined_call_operand.vmem [shape: f32[1,2], index: 8, kind: input, shape index: {}]
  %s9 = inlined_call_operand.hbm [shape: f32[2,2], index: 9, kind: output, shape index: {}]
  %s10 = sld [smem:[#allocation0]]
  $region46: #{tpu_custom_call.1} parent=0
    _
  %s12 = ssub.s32 1, %s10
  %s13 = scalar_select 0, %s12, %s10
  $region1: #{tpu_custom_call.1} parent=0
    #allocation2 [shape = 'u8[1024]{0}', space=vmem, size = 0x400, scoped, tag = 'output window, operand 0, single buffered']
    #allocation3 [shape = 's32[1]{0}', space=sflag, size = 0x4, scoped, tag = 'scoped memory for tpu_custom_call.1']
    %14 = vsyncpa [#allocation3], 0
    // Predicated region
    $region2: #{tpu_custom_call.1} parent=1 // pred_check
      _
    $region3: #{tpu_custom_call.1} parent=1 // pred_check_branch
      %16 = sbr.rel (0) target = $region5
    $region4: #{tpu_custom_call.1} parent=1 // pred_region
      _
    $region5: #{tpu_custom_call.1} parent=1 // pred_fallthru
      _
    // Predicated region
    $region6: #{tpu_custom_call.1} parent=1 // pred_check
      _
    $region7: #{tpu_custom_call.1} parent=1 // pred_check_branch
      %18 = sbr.rel (0) target = $region9
    $region8: #{tpu_custom_call.1} parent=1 // pred_region
      _
    $region9: #{tpu_custom_call.1} parent=1 // pred_fallthru
      _
    // Predicated region
    $region10: #{tpu_custom_call.1} parent=1 // pred_check
      _
    $region11: #{tpu_custom_call.1} parent=1 // pred_check_branch
      %20 = sbr.rel (0) target = $region13
    $region12: #{tpu_custom_call.1} parent=1 // pred_region
      _
    $region13: #{tpu_custom_call.1} parent=1 // pred_fallthru
      _
    // Predicated region
    $region14: #{tpu_custom_call.1} parent=1 // pred_check
      _
    $region15: #{tpu_custom_call.1} parent=1 // pred_check_branch
      %22 = sbr.rel (0) target = $region17
    $region16: #{tpu_custom_call.1} parent=1 // pred_region
      _
    $region17: #{tpu_custom_call.1} parent=1 // pred_fallthru
      _
    // Predicated region
    $region18: #{tpu_custom_call.1} parent=1 // pred_check
      _
    $region19: #{tpu_custom_call.1} parent=1 // pred_check_branch
      %24 = sbr.rel (0) target = $region21
    $region20: #{tpu_custom_call.1} parent=1 // pred_region
      _
    $region21: #{tpu_custom_call.1} parent=1 // pred_fallthru
      _
    // Predicated region
    $region22: #{tpu_custom_call.1} parent=1 // pred_check
      _
    $region23: #{tpu_custom_call.1} parent=1 // pred_check_branch
      %26 = sbr.rel (0) target = $region25
    $region24: #{tpu_custom_call.1} parent=1 // pred_region
      _
    $region25: #{tpu_custom_call.1} parent=1 // pred_fallthru
      _
    // Predicated region
    $region26: #{tpu_custom_call.1} parent=1 // pred_check
      _
    $region27: #{tpu_custom_call.1} parent=1 // pred_check_branch
      %28 = sbr.rel (0) target = $region29
    $region28: #{tpu_custom_call.1} parent=1 // pred_region
      _
    $region29: #{tpu_custom_call.1} parent=1 // pred_fallthru
      _
    // Predicated region
    $region30: #{tpu_custom_call.1} parent=1 // pred_check
      _
    $region31: #{tpu_custom_call.1} parent=1 // pred_check_branch
      %30 = sbr.rel (0) target = $region33
    $region32: #{tpu_custom_call.1} parent=1 // pred_region
      _
    $region33: #{tpu_custom_call.1} parent=1 // pred_fallthru
      _
    // Predicated region
    $region34: #{tpu_custom_call.1} parent=1 // pred_check
      _
    $region35: #{tpu_custom_call.1} parent=1 // pred_check_branch
      %32 = sbr.rel (0) target = $region37
    $region36: #{tpu_custom_call.1} parent=1 // pred_region
      _
    $region37: #{tpu_custom_call.1} parent=1 // pred_fallthru
      _
    %v34 = vld [vmem:[%s0] sm:$0x3]
    %v35 = vlaneseq
    %v36 = vshrl.u32 %v35, 7
    %v37 = vsub.s32 0, %v36
    %v38 = vrot.slane %v34, %v37
    %40 = vbcast.lane.b32.xlu0 %v38, 256
    %v41 = vpop.permute.xlu0 %40
    %s43 = sor.u32 256, 8
    %44 = vbcast.lane.b32.xlu0 %v38, %s43
    %v45 = vpop.permute.xlu0 %44
    %v46 = vlaneseq
    %v47 = vshrl.u32 %v46, 7
    %v48 = vsub.s32 1, %v47
    %v49 = vrot.slane %v34, %v48
    %51 = vbcast.lane.b32.xlu0 %v49, 256
    %v52 = vpop.permute.xlu0 %51
    %s54 = sor.u32 256, 8
    %55 = vbcast.lane.b32.xlu0 %v49, %s54
    %v56 = vpop.permute.xlu0 %55
    %v57 = vld [vmem:[%s1] sm:$0x7]
    %v58 = vld [vmem:[%s2] sm:$0x1]
    %vm63 = vcmask 1040384
    %v64 = vrot.slane %v41, 7
    %v65 = vrot.slane %v45, 7
    %v66 = vsel %vm63, %v64, %v65
    %v67 = vrot.slane %v52, 7
    %v68 = vrot.slane %v56, 7
    %v69 = vsel %vm63, %v67, %v68
    %v76 = vsel %vm63, 0.0, %v64
    %v77 = vsel %vm63, 0.0, %v67
    %v78 = vsel %vm63, %v65, 0.0
    %v79 = vsel %vm63, %v68, 0.0
    %vm84 = vcmask 1046528
    %v85 = vrot.slane %v76, 1
    %v86 = vrot.slane %v66, 1
    %v87 = vsel %vm84, %v85, %v86
    %v88 = vrot.slane %v78, 1
    %v89 = vsel %vm84, %v86, %v88
    %v90 = vrot.slane %v77, 1
    %v91 = vrot.slane %v69, 1
    %v92 = vsel %vm84, %v90, %v91
    %v93 = vrot.slane %v79, 1
    %v94 = vsel %vm84, %v91, %v93
    %95 = vrot.lane.b32.xlu0 %v87, 1
    %v96 = vpop.permute.xlu0 %95
    %97 = vrot.lane.b32.xlu0 %v89, 1
    %v98 = vpop.permute.xlu0 %97
    %99 = vrot.lane.b32.xlu0 %v92, 1
    %v100 = vpop.permute.xlu0 %99
    %101 = vrot.lane.b32.xlu0 %v94, 1
    %v102 = vpop.permute.xlu0 %101
    %vm107 = vcmask 1045504
    %v108 = vrot.slane %v76, 2
    %v109 = vrot.slane %v66, 2
    %v110 = vsel %vm107, %v108, %v109
    %v111 = vrot.slane %v78, 2
    %v112 = vsel %vm107, %v109, %v111
    %v113 = vrot.slane %v77, 2
    %v114 = vrot.slane %v69, 2
    %v115 = vsel %vm107, %v113, %v114
    %v116 = vrot.slane %v79, 2
    %v117 = vsel %vm107, %v114, %v116
    %118 = vrot.lane.b32.xlu0 %v110, 2
    %v119 = vpop.permute.xlu0 %118
    %120 = vrot.lane.b32.xlu0 %v112, 2
    %v121 = vpop.permute.xlu0 %120
    %122 = vrot.lane.b32.xlu0 %v115, 2
    %v123 = vpop.permute.xlu0 %122
    %124 = vrot.lane.b32.xlu0 %v117, 2
    %v125 = vpop.permute.xlu0 %124
    %vm130 = vcmask 7168
    %v131 = vsel %vm130, %v76, %v96
    %v132 = vsel %vm130, %v66, %v98
    %v133 = vsel %vm130, %v77, %v100
    %v134 = vsel %vm130, %v69, %v102
    %vm135 = vcmask 15360
    %v136 = vsel %vm135, %v131, %v119
    %v137 = vsel %vm135, %v132, %v121
    %v138 = vsel %vm135, %v133, %v123
    %v139 = vsel %vm135, %v134, %v125
    %vm140 = vcmask 23552
    %v142 = vsel %vm140, %v136, 0
    %v145 = vsel %vm140, %v137, 0
    %v148 = vsel %vm140, %v138, 0
    %v151 = vsel %vm140, %v139, 0
    %vm153 = vcmask 1042432
    %v155 = vsel %vm153, %v57, 0
    %157 = vmatprep.subr.mxu0 0.0
    %158 = vmatpush1.msra.mxu0 %v155
    %159 = vmatprep.subr.mxu0 0.0
    %160 = vmatpush1.msra.mxu0 0.0
    %161 = vmatprep.subr.mxu0 0.0
    %162 = vmatpush1.msra.mxu0 0.0
    %163 = vmatprep.subr.mxu0 0.0
    %164 = vmatpush1.msra.mxu0 0.0
    %165 = vmatprep.subr.mxu0 0.0
    %166 = vmatpush1.msra.mxu0 0.0
    %167 = vmatprep.subr.mxu0 0.0
    %168 = vmatpush1.msra.mxu0 0.0
    %169 = vmatprep.subr.mxu0 0.0
    %170 = vmatpush1.msra.mxu0 0.0
    %171 = vmatprep.subr.mxu0 0.0
    %172 = vmatpush1.msra.mxu0 0.0
    %173 = vmatprep.subr.mxu0 0.0
    %174 = vmatpush1.msra.mxu0 0.0
    %175 = vmatprep.subr.mxu0 0.0
    %176 = vmatpush1.msra.mxu0 0.0
    %177 = vmatprep.subr.mxu0 0.0
    %178 = vmatpush1.msra.mxu0 0.0
    %179 = vmatprep.subr.mxu0 0.0
    %180 = vmatpush1.msra.mxu0 0.0
    %181 = vmatprep.subr.mxu0 0.0
    %182 = vmatpush1.msra.mxu0 0.0
    %183 = vmatprep.subr.mxu0 0.0
    %184 = vmatpush1.msra.mxu0 0.0
    %185 = vmatprep.subr.mxu0 0.0
    %186 = vmatpush1.msra.mxu0 0.0
    %187 = vmatprep.subr.mxu0 0.0
    %188 = vmatpush1.msra.mxu0 0.0
    %189 = vmatprep.subr.mxu0 0.0
    %190 = vmatpush1.msra.mxu0 0.0
    %191 = vmatprep.subr.mxu0 0.0
    %192 = vmatpush1.msra.mxu0 0.0
    %193 = vmatprep.subr.mxu0 0.0
    %194 = vmatpush1.msra.mxu0 0.0
    %195 = vmatprep.subr.mxu0 0.0
    %196 = vmatpush1.msra.mxu0 0.0
    %197 = vmatprep.subr.mxu0 0.0
    %198 = vmatpush1.msra.mxu0 0.0
    %199 = vmatprep.subr.mxu0 0.0
    %200 = vmatpush1.msra.mxu0 0.0
    %201 = vmatprep.subr.mxu0 0.0
    %202 = vmatpush1.msra.mxu0 0.0
    %203 = vmatprep.subr.mxu0 0.0
    %204 = vmatpush1.msra.mxu0 0.0
    %205 = vmatprep.subr.mxu0 0.0
    %206 = vmatpush1.msra.mxu0 0.0
    %207 = vmatprep.subr.mxu0 0.0
    %208 = vmatpush1.msra.mxu0 0.0
    %209 = vmatprep.subr.mxu0 0.0
    %210 = vmatpush1.msra.mxu0 0.0
    %211 = vmatprep.subr.mxu0 0.0
    %212 = vmatpush1.msra.mxu0 0.0
    %213 = vmatprep.subr.mxu0 0.0
    %214 = vmatpush1.msra.mxu0 0.0
    %215 = vmatprep.subr.mxu0 0.0
    %216 = vmatpush1.msra.mxu0 0.0
    %217 = vmatprep.subr.mxu0 0.0
    %218 = vmatpush1.msra.mxu0 0.0
    %219 = vmatprep.subr.mxu0 0.0
    %220 = vmatpush1.msra.mxu0 0.0
    %221 = vmatprep.mubr.f32.mxu0 0.0
    %222 = vmatmul.mubr.f32.gmra.mrb[0].mxu0 %v142
    %v223 = vpop.f32.mrb[0].mxu0
    %v224 = vadd.f32 0.0, %v223
    %v225 = vpop.f32.mrb[0].mxu0
    %226 = vmatprep.mubr.f32.mxu0 0.0
    %227 = vmatmul.mubr.f32.gmra.mrb[0].mxu0 %v145
    %v228 = vpop.f32.mrb[0].mxu0
    %v229 = vadd.f32 0.0, %v228
    %v230 = vpop.f32.mrb[0].mxu0
    %231 = vmatprep.mubr.f32.mxu0 0.0
    %232 = vmatmul.mubr.f32.gmra.mrb[0].mxu0 %v148
    %v233 = vpop.f32.mrb[0].mxu0
    %v234 = vadd.f32 0.0, %v233
    %v235 = vpop.f32.mrb[0].mxu0
    %236 = vmatprep.mubr.f32.mxu0 0.0
    %237 = vmatmul.mubr.f32.gmra.mrb[0].mxu0 %v151
    %v238 = vpop.f32.mrb[0].mxu0
    %v239 = vadd.f32 0.0, %v238
    %v240 = vpop.f32.mrb[0].mxu0
    %241 = vdwg.mxu0
    %v243 = vlaneseq
    %v244 = vshrl.u32 %v243, 7
    %v245 = vsub.s32 0, %v244
    %v246 = vrot.slane %v58, %v245
    %v248 = vadd.f32 %v224, %v246
    %v249 = vadd.f32 %v229, %v246
    %v250 = vadd.f32 %v234, %v246
    %v251 = vadd.f32 %v239, %v246
    %v252 = vmax.f32 %v248, 0.0
    %v253 = vmax.f32 %v249, 0.0
    %v254 = vmax.f32 %v250, 0.0
    %v255 = vmax.f32 %v251, 0.0
    %v260 = vcombine.high %v252, %v252
    %v262 = vunpack.c.l.s4 1983009808
    %v263 = vunpack.c.0.s8 %v262
    %v264 = vlaneseq
    %v265 = vshrl.u32 %v264, 7
    %v266 = vsub.s32 %v263, %v265
    %v267 = vrot.slane %v252, %v266
    %v269 = vunpack.c.l.s4 1983009808
    %v270 = vunpack.c.0.s8 %v269
    %v271 = vlaneseq
    %v272 = vshrl.u32 %v271, 7
    %v273 = vsub.s32 %v270, %v272
    %v274 = vrot.slane %v260, %v273
    %v275 = vcombine.high %v267, %v267
    %v276 = vcombine.high %v274, %v274
    %v277 = vcombine.high %v253, %v253
    %v279 = vunpack.c.l.s4 1983009808
    %v280 = vunpack.c.0.s8 %v279
    %v281 = vlaneseq
    %v282 = vshrl.u32 %v281, 7
    %v283 = vsub.s32 %v280, %v282
    %v284 = vrot.slane %v253, %v283
    %v286 = vunpack.c.l.s4 1983009808
    %v287 = vunpack.c.0.s8 %v286
    %v288 = vlaneseq
    %v289 = vshrl.u32 %v288, 7
    %v290 = vsub.s32 %v287, %v289
    %v291 = vrot.slane %v277, %v290
    %v292 = vcombine.high %v284, %v284
    %v293 = vcombine.high %v291, %v291
    %v294 = vcombine.high %v254, %v254
    %v296 = vunpack.c.l.s4 1983009808
    %v297 = vunpack.c.0.s8 %v296
    %v298 = vlaneseq
    %v299 = vshrl.u32 %v298, 7
    %v300 = vsub.s32 %v297, %v299
    %v301 = vrot.slane %v254, %v300
    %v303 = vunpack.c.l.s4 1983009808
    %v304 = vunpack.c.0.s8 %v303
    %v305 = vlaneseq
    %v306 = vshrl.u32 %v305, 7
    %v307 = vsub.s32 %v304, %v306
    %v308 = vrot.slane %v294, %v307
    %v309 = vcombine.high %v301, %v301
    %v310 = vcombine.high %v308, %v308
    %v311 = vcombine.high %v255, %v255
    %v313 = vunpack.c.l.s4 1983009808
    %v314 = vunpack.c.0.s8 %v313
    %v315 = vlaneseq
    %v316 = vshrl.u32 %v315, 7
    %v317 = vsub.s32 %v314, %v316
    %v318 = vrot.slane %v255, %v317
    %v320 = vunpack.c.l.s4 1983009808
    %v321 = vunpack.c.0.s8 %v320
    %v322 = vlaneseq
    %v323 = vshrl.u32 %v322, 7
    %v324 = vsub.s32 %v321, %v323
    %v325 = vrot.slane %v311, %v324
    %v326 = vcombine.high %v318, %v318
    %v327 = vcombine.high %v325, %v325
    %v344 = vrot.slane %v267, 7
    %v345 = vrot.slane %v344, 2
    %v346 = vrot.slane %v275, 7
    %v347 = vrot.slane %v346, 2
    %v348 = vrot.slane %v274, 7
    %v349 = vrot.slane %v348, 2
    %v350 = vrot.slane %v276, 7
    %v351 = vrot.slane %v350, 2
    %v352 = vrot.slane %v284, 7
    %v353 = vrot.slane %v352, 2
    %v354 = vrot.slane %v292, 7
    %v355 = vrot.slane %v354, 2
    %v356 = vrot.slane %v291, 7
    %v357 = vrot.slane %v356, 2
    %v358 = vrot.slane %v293, 7
    %v359 = vrot.slane %v358, 2
    %v360 = vrot.slane %v301, 7
    %v361 = vrot.slane %v360, 2
    %v362 = vrot.slane %v309, 7
    %v363 = vrot.slane %v362, 2
    %v364 = vrot.slane %v308, 7
    %v365 = vrot.slane %v364, 2
    %v366 = vrot.slane %v310, 7
    %v367 = vrot.slane %v366, 2
    %v368 = vrot.slane %v318, 7
    %v369 = vrot.slane %v368, 2
    %v370 = vrot.slane %v326, 7
    %v371 = vrot.slane %v370, 2
    %v372 = vrot.slane %v325, 7
    %v373 = vrot.slane %v372, 2
    %v374 = vrot.slane %v327, 7
    %v375 = vrot.slane %v374, 2
    %v392 = vmax.f32 %v267, %v345
    %v393 = vmax.f32 %v275, %v347
    %v394 = vmax.f32 %v274, %v349
    %v395 = vmax.f32 %v276, %v351
    %v396 = vmax.f32 %v284, %v353
    %v397 = vmax.f32 %v292, %v355
    %v398 = vmax.f32 %v291, %v357
    %v399 = vmax.f32 %v293, %v359
    %v400 = vmax.f32 %v301, %v361
    %v401 = vmax.f32 %v309, %v363
    %v402 = vmax.f32 %v308, %v365
    %v403 = vmax.f32 %v310, %v367
    %v404 = vmax.f32 %v318, %v369
    %v405 = vmax.f32 %v326, %v371
    %v406 = vmax.f32 %v325, %v373
    %v407 = vmax.f32 %v327, %v375
    %v408 = vld [vmem:[%s3] sm:$0xf]
    %v409 = vld [vmem:[%s3 + $0x4] sm:$0xf]
    %v410 = vld [vmem:[%s3 + $0x8] sm:$0xf]
    %v411 = vld [vmem:[%s3 + $0xc] sm:$0xf]
    %v412 = vld [vmem:[%s3 + $0x10] sm:$0xf]
    %v413 = vld [vmem:[%s3 + $0x14] sm:$0xf]
    %v414 = vld [vmem:[%s3 + $0x18] sm:$0xf]
    %v415 = vld [vmem:[%s3 + $0x1c] sm:$0xf]
    %v416 = vld [vmem:[%s3 + $0x20] sm:$0xf]
    %v417 = vld [vmem:[%s3 + $0x24] sm:$0xf]
    %v418 = vld [vmem:[%s3 + $0x28] sm:$0xf]
    %v419 = vld [vmem:[%s3 + $0x2c] sm:$0xf]
    %v420 = vld [vmem:[%s3 + $0x30] sm:$0xf]
    %v421 = vld [vmem:[%s3 + $0x34] sm:$0xf]
    %v422 = vld [vmem:[%s3 + $0x38] sm:$0xf]
    %v423 = vld [vmem:[%s3 + $0x3c] sm:$0xf]
    %v424 = vld [vmem:[%s3 + $0x40] sm:$0xf]
    %v425 = vld [vmem:[%s3 + $0x44] sm:$0xf]
    %v426 = vld [vmem:[%s3 + $0x48] sm:$0xf]
    %v427 = vld [vmem:[%s3 + $0x4c] sm:$0xf]
    %v428 = vld [vmem:[%s3 + $0x50] sm:$0xf]
    %v429 = vld [vmem:[%s3 + $0x54] sm:$0xf]
    %v430 = vld [vmem:[%s3 + $0x58] sm:$0xf]
    %v431 = vld [vmem:[%s3 + $0x5c] sm:$0xf]
    %v432 = vld [vmem:[%s4] sm:$0x1]
    %v449 = vlaneseq
    %v450 = vshrl.u32 %v449, 7
    %v451 = vsub.s32 0, %v450
    %v452 = vrot.slane %v392, %v451
    %v453 = vlaneseq
    %v454 = vshrl.u32 %v453, 7
    %v455 = vsub.s32 0, %v454
    %v456 = vrot.slane %v393, %v455
    %v457 = vlaneseq
    %v458 = vshrl.u32 %v457, 7
    %v459 = vsub.s32 0, %v458
    %v460 = vrot.slane %v394, %v459
    %v461 = vlaneseq
    %v462 = vshrl.u32 %v461, 7
    %v463 = vsub.s32 0, %v462
    %v464 = vrot.slane %v395, %v463
    %v465 = vlaneseq
    %v466 = vshrl.u32 %v465, 7
    %v467 = vsub.s32 0, %v466
    %v468 = vrot.slane %v396, %v467
    %v469 = vlaneseq
    %v470 = vshrl.u32 %v469, 7
    %v471 = vsub.s32 0, %v470
    %v472 = vrot.slane %v397, %v471
    %v473 = vlaneseq
    %v474 = vshrl.u32 %v473, 7
    %v475 = vsub.s32 0, %v474
    %v476 = vrot.slane %v398, %v475
    %v477 = vlaneseq
    %v478 = vshrl.u32 %v477, 7
    %v479 = vsub.s32 0, %v478
    %v480 = vrot.slane %v399, %v479
    %v481 = vlaneseq
    %v482 = vshrl.u32 %v481, 7
    %v483 = vsub.s32 0, %v482
    %v484 = vrot.slane %v400, %v483
    %v485 = vlaneseq
    %v486 = vshrl.u32 %v485, 7
    %v487 = vsub.s32 0, %v486
    %v488 = vrot.slane %v401, %v487
    %v489 = vlaneseq
    %v490 = vshrl.u32 %v489, 7
    %v491 = vsub.s32 0, %v490
    %v492 = vrot.slane %v402, %v491
    %v493 = vlaneseq
    %v494 = vshrl.u32 %v493, 7
    %v495 = vsub.s32 0, %v494
    %v496 = vrot.slane %v403, %v495
    %v497 = vlaneseq
    %v498 = vshrl.u32 %v497, 7
    %v499 = vsub.s32 0, %v498
    %v500 = vrot.slane %v404, %v499
    %v501 = vlaneseq
    %v502 = vshrl.u32 %v501, 7
    %v503 = vsub.s32 0, %v502
    %v504 = vrot.slane %v405, %v503
    %v505 = vlaneseq
    %v506 = vshrl.u32 %v505, 7
    %v507 = vsub.s32 0, %v506
    %v508 = vrot.slane %v406, %v507
    %v509 = vlaneseq
    %v510 = vshrl.u32 %v509, 7
    %v511 = vsub.s32 0, %v510
    %v512 = vrot.slane %v407, %v511
    %vm513 = vcmask 1042434
    %v514 = vsel %vm513, %v456, %v452
    %vm515 = vcmask 1043459
    %v516 = vsel %vm515, %v460, %v514
    %vm517 = vcmask 1044484
    %v518 = vsel %vm517, %v464, %v516
    %vm519 = vcmask 1045509
    %v520 = vsel %vm519, %v468, %v518
    %vm521 = vcmask 1046534
    %v522 = vsel %vm521, %v472, %v520
    %vm523 = vcmask 1047559
    %v524 = vsel %vm523, %v476, %v522
    %v525 = vsel %vm513, %v488, %v484
    %v526 = vsel %vm515, %v492, %v525
    %v527 = vsel %vm517, %v496, %v526
    %v528 = vsel %vm519, %v500, %v527
    %v529 = vsel %vm521, %v504, %v528
    %v530 = vsel %vm523, %v508, %v529
    %v535 = vsel %vm63, 0.0, %v524
    %v536 = vsel %vm63, 0.0, %v530
    %v537 = vsel %vm63, %v480, 0.0
    %v538 = vsel %vm63, %v512, 0.0
    %v543 = vrot.slane %v535, 1
    %v544 = vrot.slane %v537, 1
    %v545 = vsel %vm84, %v543, %v544
    %v546 = vrot.slane %v536, 1
    %v547 = vrot.slane %v538, 1
    %v548 = vsel %vm84, %v546, %v547
    %549 = vrot.lane.b32.xlu0 %v545, 64
    %v550 = vpop.permute.xlu0 %549
    %551 = vrot.lane.b32.xlu0 %v548, 64
    %v552 = vpop.permute.xlu0 %551
    %v555 = vrot.slane %v535, 2
    %v556 = vrot.slane %v537, 2
    %v557 = vsel %vm107, %v555, %v556
    %v558 = vrot.slane %v536, 2
    %v559 = vrot.slane %v538, 2
    %v560 = vsel %vm107, %v558, %v559
    %vm563 = vcmask 523264
    %v564 = vsel %vm563, %v535, %v550
    %v565 = vsel %vm563, %v536, %v552
    %v566 = vpack.c.bf16 %v565, %v564
    %v567 = vpack.c.bf16 %v560, %v557
    %v592 = vunpack.c.l.b16 %v408
    %v593 = vunpack.c.l.b16 %v409
    %v594 = vunpack.c.l.b16 %v410
    %v595 = vunpack.c.l.b16 %v411
    %v596 = vunpack.c.l.b16 %v412
    %v597 = vunpack.c.l.b16 %v413
    %v598 = vunpack.c.l.b16 %v414
    %v599 = vunpack.c.l.b16 %v415
    %v600 = vunpack.c.l.b16 %v416
    %v601 = vunpack.c.l.b16 %v417
    %v602 = vunpack.c.l.b16 %v418
    %v603 = vunpack.c.l.b16 %v419
    %v604 = vunpack.c.l.b16 %v420
    %v605 = vunpack.c.l.b16 %v421
    %v606 = vunpack.c.l.b16 %v422
    %v607 = vunpack.c.l.b16 %v423
    %v608 = vunpack.c.l.b16 %v424
    %v609 = vunpack.c.l.b16 %v425
    %v610 = vunpack.c.l.b16 %v426
    %v611 = vunpack.c.l.b16 %v427
    %v612 = vunpack.c.l.b16 %v428
    %v613 = vunpack.c.l.b16 %v429
    %v614 = vunpack.c.l.b16 %v430
    %v615 = vunpack.c.l.b16 %v431
    %v616 = vpack.c.b16 %v593, %v592
    %v617 = vpack.c.b16 %v595, %v594
    %v618 = vpack.c.b16 %v597, %v596
    %v619 = vpack.c.b16 %v599, %v598
    %v620 = vpack.c.b16 %v601, %v600
    %v621 = vpack.c.b16 %v603, %v602
    %v622 = vpack.c.b16 %v605, %v604
    %v623 = vpack.c.b16 %v607, %v606
    %v624 = vpack.c.b16 %v609, %v608
    %v625 = vpack.c.b16 %v611, %v610
    %v626 = vpack.c.b16 %v613, %v612
    %v627 = vpack.c.b16 %v615, %v614
    %v641 = vsel %vm563, %v567, 0
    %643 = vmatprep.subr.bf16.mxu0 0
    %644 = vmatpush1.bf16.msra.mxu0 %v616
    %645 = vmatprep.subr.bf16.mxu0 0
    %646 = vmatpush1.bf16.msra.mxu0 %v617
    %647 = vmatprep.subr.bf16.mxu0 0
    %648 = vmatpush1.bf16.msra.mxu0 %v618
    %649 = vmatprep.subr.bf16.mxu0 0
    %650 = vmatpush1.bf16.msra.mxu0 %v619
    %651 = vmatprep.subr.bf16.mxu0 0
    %652 = vmatpush1.bf16.msra.mxu0 %v620
    %653 = vmatprep.subr.bf16.mxu0 0
    %654 = vmatpush1.bf16.msra.mxu0 %v621
    %655 = vmatprep.subr.bf16.mxu0 0
    %656 = vmatpush1.bf16.msra.mxu0 %v622
    %657 = vmatprep.subr.bf16.mxu0 0
    %658 = vmatpush1.bf16.msra.mxu0 %v623
    %659 = vmatprep.subr.bf16.mxu0 0
    %660 = vmatpush1.bf16.msra.mxu0 %v624
    %661 = vmatprep.subr.bf16.mxu0 0
    %662 = vmatpush1.bf16.msra.mxu0 %v625
    %663 = vmatprep.subr.bf16.mxu0 0
    %664 = vmatpush1.bf16.msra.mxu0 %v626
    %665 = vmatprep.subr.bf16.mxu0 0
    %666 = vmatpush1.bf16.msra.mxu0 %v627
    %667 = vmatprep.subr.bf16.mxu0 0
    %668 = vmatpush1.bf16.msra.mxu0 0
    %669 = vmatprep.subr.bf16.mxu0 0
    %670 = vmatpush1.bf16.msra.mxu0 0
    %671 = vmatprep.subr.bf16.mxu0 0
    %672 = vmatpush1.bf16.msra.mxu0 0
    %673 = vmatprep.subr.bf16.mxu0 0
    %674 = vmatpush1.bf16.msra.mxu0 0
    %675 = vmatprep.mubr.bf16.mxu0 %v641
    %676 = vmatmul.mubr.bf16.gmra.mrb[0].mxu0 %v566
    %v677 = vpop.f32.mrb[0].mxu0
    %v678 = vadd.f32 0.0, %v677
    %v679 = vpop.f32.mrb[0].mxu0
    %v680 = vpop.f32.mrb[0].mxu0
    %v681 = vadd.f32 0.0, %v680
    %v682 = vpop.f32.mrb[0].mxu0
    %683 = vdwg.mxu0
    %v685 = vlaneseq
    %v686 = vshrl.u32 %v685, 7
    %v687 = vsub.s32 0, %v686
    %v688 = vrot.slane %v432, %v687
    %v690 = vadd.f32 %v678, %v688
    %v691 = vadd.f32 %v681, %v688
    %v692 = vmax.f32 %v690, 0.0
    %v693 = vmax.f32 %v691, 0.0
    %v696 = vcombine.high %v692, %v692
    %v698 = vunpack.c.l.s4 1983009808
    %v699 = vunpack.c.0.s8 %v698
    %v700 = vlaneseq
    %v701 = vshrl.u32 %v700, 7
    %v702 = vsub.s32 %v699, %v701
    %v703 = vrot.slane %v692, %v702
    %v705 = vunpack.c.l.s4 1983009808
    %v706 = vunpack.c.0.s8 %v705
    %v707 = vlaneseq
    %v708 = vshrl.u32 %v707, 7
    %v709 = vsub.s32 %v706, %v708
    %v710 = vrot.slane %v696, %v709
    %v711 = vcombine.high %v703, %v703
    %v712 = vcombine.high %v710, %v710
    %v713 = vcombine.high %v693, %v693
    %v715 = vunpack.c.l.s4 1983009808
    %v716 = vunpack.c.0.s8 %v715
    %v717 = vlaneseq
    %v718 = vshrl.u32 %v717, 7
    %v719 = vsub.s32 %v716, %v718
    %v720 = vrot.slane %v693, %v719
    %v722 = vunpack.c.l.s4 1983009808
    %v723 = vunpack.c.0.s8 %v722
    %v724 = vlaneseq
    %v725 = vshrl.u32 %v724, 7
    %v726 = vsub.s32 %v723, %v725
    %v727 = vrot.slane %v713, %v726
    %v728 = vcombine.high %v720, %v720
    %v729 = vcombine.high %v727, %v727
    %v738 = vrot.slane %v703, 7
    %v739 = vrot.slane %v738, 2
    %v740 = vrot.slane %v711, 7
    %v741 = vrot.slane %v740, 2
    %v742 = vrot.slane %v710, 7
    %v743 = vrot.slane %v742, 2
    %v744 = vrot.slane %v712, 7
    %v745 = vrot.slane %v744, 2
    %v746 = vrot.slane %v720, 7
    %v747 = vrot.slane %v746, 2
    %v748 = vrot.slane %v728, 7
    %v749 = vrot.slane %v748, 2
    %v750 = vrot.slane %v727, 7
    %v751 = vrot.slane %v750, 2
    %v752 = vrot.slane %v729, 7
    %v753 = vrot.slane %v752, 2
    %v762 = vmax.f32 %v703, %v739
    %v763 = vmax.f32 %v711, %v741
    %v764 = vmax.f32 %v710, %v743
    %v765 = vmax.f32 %v712, %v745
    %v766 = vmax.f32 %v720, %v747
    %v767 = vmax.f32 %v728, %v749
    %v768 = vmax.f32 %v727, %v751
    %v769 = vmax.f32 %v729, %v753
    %v770 = vld [vmem:[%s5] sm:$0xff]
    %v771 = vld [vmem:[%s5 + $0x8] sm:$0xff]
    %v772 = vld [vmem:[%s5 + $0x10] sm:$0xff]
    %v773 = vld [vmem:[%s5 + $0x18] sm:$0xff]
    %v774 = vld [vmem:[%s5 + $0x20] sm:$0xff]
    %v775 = vld [vmem:[%s5 + $0x28] sm:$0xff]
    %v776 = vld [vmem:[%s5 + $0x30] sm:$0xff]
    %v777 = vld [vmem:[%s5 + $0x38] sm:$0xff]
    %v778 = vld [vmem:[%s5 + $0x40] sm:$0xff]
    %v779 = vld [vmem:[%s5 + $0x48] sm:$0xff]
    %v780 = vld [vmem:[%s5 + $0x50] sm:$0xff]
    %v781 = vld [vmem:[%s5 + $0x58] sm:$0xff]
    %v782 = vld [vmem:[%s5 + $0x60] sm:$0xff]
    %v783 = vld [vmem:[%s5 + $0x68] sm:$0xff]
    %v784 = vld [vmem:[%s5 + $0x70] sm:$0xff]
    %v785 = vld [vmem:[%s5 + $0x78] sm:$0xff]
    %v786 = vld [vmem:[%s5 + $0x80] sm:$0xff]
    %v787 = vld [vmem:[%s5 + $0x88] sm:$0xff]
    %v788 = vld [vmem:[%s5 + $0x90] sm:$0xff]
    %v789 = vld [vmem:[%s5 + $0x98] sm:$0xff]
    %v790 = vld [vmem:[%s5 + $0xa0] sm:$0xff]
    %v791 = vld [vmem:[%s5 + $0xa8] sm:$0xff]
    %v792 = vld [vmem:[%s5 + $0xb0] sm:$0xff]
    %v793 = vld [vmem:[%s5 + $0xb8] sm:$0xff]
    %v794 = vld [vmem:[%s5 + $0xc0] sm:$0xff]
    %v795 = vld [vmem:[%s5 + $0xc8] sm:$0xff]
    %v796 = vld [vmem:[%s5 + $0xd0] sm:$0xff]
    %v797 = vld [vmem:[%s5 + $0xd8] sm:$0xff]
    %v798 = vld [vmem:[%s5 + $0xe0] sm:$0xff]
    %v799 = vld [vmem:[%s5 + $0xe8] sm:$0xff]
    %v800 = vld [vmem:[%s5 + $0xf0] sm:$0xff]
    %v801 = vld [vmem:[%s5 + $0xf8] sm:$0xff]
    %v802 = vld [vmem:[%s5 + $0x100] sm:$0xff]
    %v803 = vld [vmem:[%s5 + $0x108] sm:$0xff]
    %v804 = vld [vmem:[%s5 + $0x110] sm:$0xff]
    %v805 = vld [vmem:[%s5 + $0x118] sm:$0xff]
    %v806 = vld [vmem:[%s5 + $0x120] sm:$0xff]
    %v807 = vld [vmem:[%s5 + $0x128] sm:$0xff]
    %v808 = vld [vmem:[%s5 + $0x130] sm:$0xff]
    %v809 = vld [vmem:[%s5 + $0x138] sm:$0xff]
    %v810 = vld [vmem:[%s5 + $0x140] sm:$0xff]
    %v811 = vld [vmem:[%s5 + $0x148] sm:$0xff]
    %v812 = vld [vmem:[%s5 + $0x150] sm:$0xff]
    %v813 = vld [vmem:[%s5 + $0x158] sm:$0xff]
    %v814 = vld [vmem:[%s5 + $0x160] sm:$0xff]
    %v815 = vld [vmem:[%s5 + $0x168] sm:$0xff]
    %v816 = vld [vmem:[%s5 + $0x170] sm:$0xff]
    %v817 = vld [vmem:[%s5 + $0x178] sm:$0xff]
    %v818 = vld [vmem:[%s6] sm:$0x3]
    %v827 = vlaneseq
    %v828 = vshrl.u32 %v827, 7
    %v829 = vsub.s32 0, %v828
    %v830 = vrot.slane %v762, %v829
    %v831 = vlaneseq
    %v832 = vshrl.u32 %v831, 7
    %v833 = vsub.s32 0, %v832
    %v834 = vrot.slane %v763, %v833
    %v835 = vlaneseq
    %v836 = vshrl.u32 %v835, 7
    %v837 = vsub.s32 0, %v836
    %v838 = vrot.slane %v764, %v837
    %v839 = vlaneseq
    %v840 = vshrl.u32 %v839, 7
    %v841 = vsub.s32 0, %v840
    %v842 = vrot.slane %v765, %v841
    %v843 = vlaneseq
    %v844 = vshrl.u32 %v843, 7
    %v845 = vsub.s32 0, %v844
    %v846 = vrot.slane %v766, %v845
    %v847 = vlaneseq
    %v848 = vshrl.u32 %v847, 7
    %v849 = vsub.s32 0, %v848
    %v850 = vrot.slane %v767, %v849
    %v851 = vlaneseq
    %v852 = vshrl.u32 %v851, 7
    %v853 = vsub.s32 0, %v852
    %v854 = vrot.slane %v768, %v853
    %v855 = vlaneseq
    %v856 = vshrl.u32 %v855, 7
    %v857 = vsub.s32 0, %v856
    %v858 = vrot.slane %v769, %v857
    %v859 = vsel %vm513, %v834, %v830
    %v860 = vsel %vm515, %v838, %v859
    %v861 = vsel %vm517, %v842, %v860
    %v862 = vsel %vm513, %v850, %v846
    %v863 = vsel %vm515, %v854, %v862
    %v864 = vsel %vm517, %v858, %v863
    %v867 = vsel %vm63, 0.0, %v861
    %v868 = vsel %vm63, 0.0, %v864
    %vm869 = vcmask 1044480
    %v870 = vsel %vm869, %v867, 0.0
    %v871 = vsel %vm869, %v868, 0.0
    %v874 = vrot.slane %v870, 1
    %v875 = vrot.slane %v871, 1
    %v876 = vrot.slane %v870, 2
    %v877 = vrot.slane %v871, 2
    %v878 = vcombine.low %v870, %v874
    %v879 = vcombine.low %v871, %v875
    %v880 = vcombine.low %v878, %v879
    %v881 = vcombine.high %v878, %v879
    %v882 = vcombine.low %v876, %v877
    %v886 = vpack.c.bf16 %v880, %v880
    %v887 = vpack.c.bf16 %v881, %v881
    %v888 = vpack.c.bf16 %v882, %v882
    %v937 = vunpack.c.l.b16 %v770
    %v938 = vunpack.c.h.b16 %v770
    %v939 = vunpack.c.l.b16 %v771
    %v940 = vunpack.c.h.b16 %v771
    %v941 = vunpack.c.l.b16 %v772
    %v942 = vunpack.c.h.b16 %v772
    %v943 = vunpack.c.l.b16 %v773
    %v944 = vunpack.c.h.b16 %v773
    %v945 = vunpack.c.l.b16 %v774
    %v946 = vunpack.c.h.b16 %v774
    %v947 = vunpack.c.l.b16 %v775
    %v948 = vunpack.c.h.b16 %v775
    %v949 = vunpack.c.l.b16 %v776
    %v950 = vunpack.c.h.b16 %v776
    %v951 = vunpack.c.l.b16 %v777
    %v952 = vunpack.c.h.b16 %v777
    %v953 = vunpack.c.l.b16 %v778
    %v954 = vunpack.c.h.b16 %v778
    %v955 = vunpack.c.l.b16 %v779
    %v956 = vunpack.c.h.b16 %v779
    %v957 = vunpack.c.l.b16 %v780
    %v958 = vunpack.c.h.b16 %v780
    %v959 = vunpack.c.l.b16 %v781
    %v960 = vunpack.c.h.b16 %v781
    %v961 = vunpack.c.l.b16 %v782
    %v962 = vunpack.c.h.b16 %v782
    %v963 = vunpack.c.l.b16 %v783
    %v964 = vunpack.c.h.b16 %v783
    %v965 = vunpack.c.l.b16 %v784
    %v966 = vunpack.c.h.b16 %v784
    %v967 = vunpack.c.l.b16 %v785
    %v968 = vunpack.c.h.b16 %v785
    %v969 = vunpack.c.l.b16 %v786
    %v970 = vunpack.c.h.b16 %v786
    %v971 = vunpack.c.l.b16 %v787
    %v972 = vunpack.c.h.b16 %v787
    %v973 = vunpack.c.l.b16 %v788
    %v974 = vunpack.c.h.b16 %v788
    %v975 = vunpack.c.l.b16 %v789
    %v976 = vunpack.c.h.b16 %v789
    %v977 = vunpack.c.l.b16 %v790
    %v978 = vunpack.c.h.b16 %v790
    %v979 = vunpack.c.l.b16 %v791
    %v980 = vunpack.c.h.b16 %v791
    %v981 = vunpack.c.l.b16 %v792
    %v982 = vunpack.c.h.b16 %v792
    %v983 = vunpack.c.l.b16 %v793
    %v984 = vunpack.c.h.b16 %v793
    %v985 = vunpack.c.l.b16 %v794
    %v986 = vunpack.c.h.b16 %v794
    %v987 = vunpack.c.l.b16 %v795
    %v988 = vunpack.c.h.b16 %v795
    %v989 = vunpack.c.l.b16 %v796
    %v990 = vunpack.c.h.b16 %v796
    %v991 = vunpack.c.l.b16 %v797
    %v992 = vunpack.c.h.b16 %v797
    %v993 = vunpack.c.l.b16 %v798
    %v994 = vunpack.c.h.b16 %v798
    %v995 = vunpack.c.l.b16 %v799
    %v996 = vunpack.c.h.b16 %v799
    %v997 = vunpack.c.l.b16 %v800
    %v998 = vunpack.c.h.b16 %v800
    %v999 = vunpack.c.l.b16 %v801
    %v1000 = vunpack.c.h.b16 %v801
    %v1001 = vunpack.c.l.b16 %v802
    %v1002 = vunpack.c.h.b16 %v802
    %v1003 = vunpack.c.l.b16 %v803
    %v1004 = vunpack.c.h.b16 %v803
    %v1005 = vunpack.c.l.b16 %v804
    %v1006 = vunpack.c.h.b16 %v804
    %v1007 = vunpack.c.l.b16 %v805
    %v1008 = vunpack.c.h.b16 %v805
    %v1009 = vunpack.c.l.b16 %v806
    %v1010 = vunpack.c.h.b16 %v806
    %v1011 = vunpack.c.l.b16 %v807
    %v1012 = vunpack.c.h.b16 %v807
    %v1013 = vunpack.c.l.b16 %v808
    %v1014 = vunpack.c.h.b16 %v808
    %v1015 = vunpack.c.l.b16 %v809
    %v1016 = vunpack.c.h.b16 %v809
    %v1017 = vunpack.c.l.b16 %v810
    %v1018 = vunpack.c.h.b16 %v810
    %v1019 = vunpack.c.l.b16 %v811
    %v1020 = vunpack.c.h.b16 %v811
    %v1021 = vunpack.c.l.b16 %v812
    %v1022 = vunpack.c.h.b16 %v812
    %v1023 = vunpack.c.l.b16 %v813
    %v1024 = vunpack.c.h.b16 %v813
    %v1025 = vunpack.c.l.b16 %v814
    %v1026 = vunpack.c.h.b16 %v814
    %v1027 = vunpack.c.l.b16 %v815
    %v1028 = vunpack.c.h.b16 %v815
    %v1029 = vunpack.c.l.b16 %v816
    %v1030 = vunpack.c.h.b16 %v816
    %v1031 = vunpack.c.l.b16 %v817
    %v1032 = vunpack.c.h.b16 %v817
    %v1033 = vpack.c.b16 %v939, %v937
    %v1034 = vpack.c.b16 %v940, %v938
    %v1035 = vpack.c.b16 %v943, %v941
    %v1036 = vpack.c.b16 %v944, %v942
    %v1037 = vpack.c.b16 %v947, %v945
    %v1038 = vpack.c.b16 %v948, %v946
    %v1039 = vpack.c.b16 %v951, %v949
    %v1040 = vpack.c.b16 %v952, %v950
    %v1041 = vpack.c.b16 %v955, %v953
    %v1042 = vpack.c.b16 %v956, %v954
    %v1043 = vpack.c.b16 %v959, %v957
    %v1044 = vpack.c.b16 %v960, %v958
    %v1045 = vpack.c.b16 %v963, %v961
    %v1046 = vpack.c.b16 %v964, %v962
    %v1047 = vpack.c.b16 %v967, %v965
    %v1048 = vpack.c.b16 %v968, %v966
    %v1049 = vpack.c.b16 %v971, %v969
    %v1050 = vpack.c.b16 %v972, %v970
    %v1051 = vpack.c.b16 %v975, %v973
    %v1052 = vpack.c.b16 %v976, %v974
    %v1053 = vpack.c.b16 %v979, %v977
    %v1054 = vpack.c.b16 %v980, %v978
    %v1055 = vpack.c.b16 %v983, %v981
    %v1056 = vpack.c.b16 %v984, %v982
    %v1057 = vpack.c.b16 %v987, %v985
    %v1058 = vpack.c.b16 %v988, %v986
    %v1059 = vpack.c.b16 %v991, %v989
    %v1060 = vpack.c.b16 %v992, %v990
    %v1061 = vpack.c.b16 %v995, %v993
    %v1062 = vpack.c.b16 %v996, %v994
    %v1063 = vpack.c.b16 %v999, %v997
    %v1064 = vpack.c.b16 %v1000, %v998
    %v1065 = vpack.c.b16 %v1003, %v1001
    %v1066 = vpack.c.b16 %v1004, %v1002
    %v1067 = vpack.c.b16 %v1007, %v1005
    %v1068 = vpack.c.b16 %v1008, %v1006
    %v1069 = vpack.c.b16 %v1011, %v1009
    %v1070 = vpack.c.b16 %v1012, %v1010
    %v1071 = vpack.c.b16 %v1015, %v1013
    %v1072 = vpack.c.b16 %v1016, %v1014
    %v1073 = vpack.c.b16 %v1019, %v1017
    %v1074 = vpack.c.b16 %v1020, %v1018
    %v1075 = vpack.c.b16 %v1023, %v1021
    %v1076 = vpack.c.b16 %v1024, %v1022
    %v1077 = vpack.c.b16 %v1027, %v1025
    %v1078 = vpack.c.b16 %v1028, %v1026
    %v1079 = vpack.c.b16 %v1031, %v1029
    %v1080 = vpack.c.b16 %v1032, %v1030
    %1129 = vmatprep.subr.bf16.mxu0 %v1034
    %1130 = vmatpush1.bf16.msra.mxu0 %v1033
    %1131 = vmatprep.subr.bf16.mxu0 %v1036
    %1132 = vmatpush1.bf16.msra.mxu0 %v1035
    %1133 = vmatprep.subr.bf16.mxu0 %v1038
    %1134 = vmatpush1.bf16.msra.mxu0 %v1037
    %1135 = vmatprep.subr.bf16.mxu0 %v1040
    %1136 = vmatpush1.bf16.msra.mxu0 %v1039
    %1137 = vmatprep.subr.bf16.mxu0 %v1042
    %1138 = vmatpush1.bf16.msra.mxu0 %v1041
    %1139 = vmatprep.subr.bf16.mxu0 %v1044
    %1140 = vmatpush1.bf16.msra.mxu0 %v1043
    %1141 = vmatprep.subr.bf16.mxu0 %v1046
    %1142 = vmatpush1.bf16.msra.mxu0 %v1045
    %1143 = vmatprep.subr.bf16.mxu0 %v1048
    %1144 = vmatpush1.bf16.msra.mxu0 %v1047
    %1145 = vmatprep.subr.bf16.mxu0 %v1050
    %1146 = vmatpush1.bf16.msra.mxu0 %v1049
    %1147 = vmatprep.subr.bf16.mxu0 %v1052
    %1148 = vmatpush1.bf16.msra.mxu0 %v1051
    %1149 = vmatprep.subr.bf16.mxu0 %v1054
    %1150 = vmatpush1.bf16.msra.mxu0 %v1053
    %1151 = vmatprep.subr.bf16.mxu0 %v1056
    %1152 = vmatpush1.bf16.msra.mxu0 %v1055
    %1153 = vmatprep.subr.bf16.mxu0 %v1058
    %1154 = vmatpush1.bf16.msra.mxu0 %v1057
    %1155 = vmatprep.subr.bf16.mxu0 %v1060
    %1156 = vmatpush1.bf16.msra.mxu0 %v1059
    %1157 = vmatprep.subr.bf16.mxu0 %v1062
    %1158 = vmatpush1.bf16.msra.mxu0 %v1061
    %1159 = vmatprep.subr.bf16.mxu0 %v1064
    %1160 = vmatpush1.bf16.msra.mxu0 %v1063
    %1161 = vmatprep.mubr.bf16.mxu0 %v887
    %1162 = vmatmul.mubr.bf16.gmra.mrb[0].mxu0 %v886
    %v1163 = vpop.f32.mrb[0].mxu0
    %v1164 = vadd.f32 0.0, %v1163
    %v1165 = vpop.f32.mrb[0].mxu0
    %v1166 = vadd.f32 0.0, %v1165
    %v1167 = vpop.f32.mrb[0].mxu0
    %v1168 = vpop.f32.mrb[0].mxu0
    %1169 = vdwg.mxu0
    %1170 = vmatprep.subr.bf16.mxu0 %v1066
    %1171 = vmatpush1.bf16.msra.mxu0 %v1065
    %1172 = vmatprep.subr.bf16.mxu0 %v1068
    %1173 = vmatpush1.bf16.msra.mxu0 %v1067
    %1174 = vmatprep.subr.bf16.mxu0 %v1070
    %1175 = vmatpush1.bf16.msra.mxu0 %v1069
    %1176 = vmatprep.subr.bf16.mxu0 %v1072
    %1177 = vmatpush1.bf16.msra.mxu0 %v1071
    %1178 = vmatprep.subr.bf16.mxu0 %v1074
    %1179 = vmatpush1.bf16.msra.mxu0 %v1073
    %1180 = vmatprep.subr.bf16.mxu0 %v1076
    %1181 = vmatpush1.bf16.msra.mxu0 %v1075
    %1182 = vmatprep.subr.bf16.mxu0 %v1078
    %1183 = vmatpush1.bf16.msra.mxu0 %v1077
    %1184 = vmatprep.subr.bf16.mxu0 %v1080
    %1185 = vmatpush1.bf16.msra.mxu0 %v1079
    %1186 = vmatprep.subr.bf16.mxu0 0
    %1187 = vmatpush1.bf16.msra.mxu0 0
    %1188 = vmatprep.subr.bf16.mxu0 0
    %1189 = vmatpush1.bf16.msra.mxu0 0
    %1190 = vmatprep.subr.bf16.mxu0 0
    %1191 = vmatpush1.bf16.msra.mxu0 0
    %1192 = vmatprep.subr.bf16.mxu0 0
    %1193 = vmatpush1.bf16.msra.mxu0 0
    %1194 = vmatprep.subr.bf16.mxu0 0
    %1195 = vmatpush1.bf16.msra.mxu0 0
    %1196 = vmatprep.subr.bf16.mxu0 0
    %1197 = vmatpush1.bf16.msra.mxu0 0
    %1198 = vmatprep.subr.bf16.mxu0 0
    %1199 = vmatpush1.bf16.msra.mxu0 0
    %1200 = vmatprep.subr.bf16.mxu0 0
    %1201 = vmatpush1.bf16.msra.mxu0 0
    %1202 = vmatprep.mubr.bf16.mxu0 0
    %1203 = vmatmul.mubr.bf16.gmra.mrb[0].mxu0 %v888
    %v1204 = vpop.f32.mrb[0].mxu0
    %v1205 = vadd.f32 %v1164, %v1204
    %v1206 = vpop.f32.mrb[0].mxu0
    %v1207 = vadd.f32 %v1166, %v1206
    %v1208 = vpop.f32.mrb[0].mxu0
    %v1209 = vpop.f32.mrb[0].mxu0
    %1210 = vdwg.mxu0
    %v1213 = vcombine.low %v1205, %v1207
    %v1214 = vcombine.high %v1205, %v1207
    %v1218 = vlaneseq
    %v1219 = vshrl.u32 %v1218, 7
    %v1220 = vsub.s32 0, %v1219
    %v1221 = vrot.slane %v818, %v1220
    %v1222 = vlaneseq
    %v1223 = vshrl.u32 %v1222, 7
    %v1224 = vsub.s32 1, %v1223
    %v1225 = vrot.slane %v818, %v1224
    %v1226 = vcombine.low %v1221, %v1225
    %v1228 = vadd.f32 %v1213, %v1226
    %v1229 = vadd.f32 %v1214, %v1226
    %v1230 = vmax.f32 %v1228, 0.0
    %v1231 = vmax.f32 %v1229, 0.0
    %v1232 = vld [vmem:[%s7] sm:$0xf]
    %v1233 = vld [vmem:[%s7 + $0x4] sm:$0xf]
    %v1234 = vld [vmem:[%s7 + $0x8] sm:$0xf]
    %v1235 = vld [vmem:[%s7 + $0xc] sm:$0xf]
    %v1236 = vld [vmem:[%s7 + $0x10] sm:$0xf]
    %v1237 = vld [vmem:[%s7 + $0x14] sm:$0xf]
    %v1238 = vld [vmem:[%s7 + $0x18] sm:$0xf]
    %v1239 = vld [vmem:[%s7 + $0x1c] sm:$0xf]
    %v1240 = vld [vmem:[%s7 + $0x20] sm:$0xf]
    %v1241 = vld [vmem:[%s7 + $0x24] sm:$0xf]
    %v1242 = vld [vmem:[%s7 + $0x28] sm:$0xf]
    %v1243 = vld [vmem:[%s7 + $0x2c] sm:$0xf]
    %v1244 = vld [vmem:[%s7 + $0x30] sm:$0xf]
    %v1245 = vld [vmem:[%s7 + $0x34] sm:$0xf]
    %v1246 = vld [vmem:[%s7 + $0x38] sm:$0xf]
    %v1247 = vld [vmem:[%s7 + $0x3c] sm:$0xf]
    %v1248 = vld [vmem:[%s7 + $0x40] sm:$0xf]
    %v1249 = vld [vmem:[%s7 + $0x44] sm:$0xf]
    %v1250 = vld [vmem:[%s7 + $0x48] sm:$0xf]
    %v1251 = vld [vmem:[%s7 + $0x4c] sm:$0xf]
    %v1252 = vld [vmem:[%s7 + $0x50] sm:$0xf]
    %v1253 = vld [vmem:[%s7 + $0x54] sm:$0xf]
    %v1254 = vld [vmem:[%s7 + $0x58] sm:$0xf]
    %v1255 = vld [vmem:[%s7 + $0x5c] sm:$0xf]
    %v1256 = vld [vmem:[%s7 + $0x60] sm:$0xf]
    %v1257 = vld [vmem:[%s7 + $0x64] sm:$0xf]
    %v1258 = vld [vmem:[%s7 + $0x68] sm:$0xf]
    %v1259 = vld [vmem:[%s7 + $0x6c] sm:$0xf]
    %v1260 = vld [vmem:[%s7 + $0x70] sm:$0xf]
    %v1261 = vld [vmem:[%s7 + $0x74] sm:$0xf]
    %v1262 = vld [vmem:[%s7 + $0x78] sm:$0xf]
    %v1263 = vld [vmem:[%s7 + $0x7c] sm:$0xf]
    %v1264 = vld [vmem:[%s7 + $0x80] sm:$0xf]
    %v1265 = vld [vmem:[%s7 + $0x84] sm:$0xf]
    %v1266 = vld [vmem:[%s7 + $0x88] sm:$0xf]
    %v1267 = vld [vmem:[%s7 + $0x8c] sm:$0xf]
    %v1268 = vld [vmem:[%s7 + $0x90] sm:$0xf]
    %v1269 = vld [vmem:[%s7 + $0x94] sm:$0xf]
    %v1270 = vld [vmem:[%s7 + $0x98] sm:$0xf]
    %v1271 = vld [vmem:[%s7 + $0x9c] sm:$0xf]
    %v1272 = vld [vmem:[%s7 + $0xa0] sm:$0xf]
    %v1273 = vld [vmem:[%s7 + $0xa4] sm:$0xf]
    %v1274 = vld [vmem:[%s7 + $0xa8] sm:$0xf]
    %v1275 = vld [vmem:[%s7 + $0xac] sm:$0xf]
    %v1276 = vld [vmem:[%s7 + $0xb0] sm:$0xf]
    %v1277 = vld [vmem:[%s7 + $0xb4] sm:$0xf]
    %v1278 = vld [vmem:[%s7 + $0xb8] sm:$0xf]
    %v1279 = vld [vmem:[%s7 + $0xbc] sm:$0xf]
    %v1280 = vld [vmem:[%s7 + $0xc0] sm:$0xf]
    %v1281 = vld [vmem:[%s7 + $0xc4] sm:$0xf]
    %v1282 = vld [vmem:[%s7 + $0xc8] sm:$0xf]
    %v1283 = vld [vmem:[%s7 + $0xcc] sm:$0xf]
    %v1284 = vld [vmem:[%s7 + $0xd0] sm:$0xf]
    %v1285 = vld [vmem:[%s7 + $0xd4] sm:$0xf]
    %v1286 = vld [vmem:[%s7 + $0xd8] sm:$0xf]
    %v1287 = vld [vmem:[%s7 + $0xdc] sm:$0xf]
    %v1288 = vld [vmem:[%s7 + $0xe0] sm:$0xf]
    %v1289 = vld [vmem:[%s7 + $0xe4] sm:$0xf]
    %v1290 = vld [vmem:[%s7 + $0xe8] sm:$0xf]
    %v1291 = vld [vmem:[%s7 + $0xec] sm:$0xf]
    %v1292 = vld [vmem:[%s7 + $0xf0] sm:$0xf]
    %v1293 = vld [vmem:[%s7 + $0xf4] sm:$0xf]
    %v1294 = vld [vmem:[%s7 + $0xf8] sm:$0xf]
    %v1295 = vld [vmem:[%s7 + $0xfc] sm:$0xf]
    %v1296 = vld [vmem:[%s7 + $0x100] sm:$0xf]
    %v1297 = vld [vmem:[%s7 + $0x104] sm:$0xf]
    %v1298 = vld [vmem:[%s7 + $0x108] sm:$0xf]
    %v1299 = vld [vmem:[%s7 + $0x10c] sm:$0xf]
    %v1300 = vld [vmem:[%s7 + $0x110] sm:$0xf]
    %v1301 = vld [vmem:[%s7 + $0x114] sm:$0xf]
    %v1302 = vld [vmem:[%s7 + $0x118] sm:$0xf]
    %v1303 = vld [vmem:[%s7 + $0x11c] sm:$0xf]
    %v1304 = vld [vmem:[%s7 + $0x120] sm:$0xf]
    %v1305 = vld [vmem:[%s7 + $0x124] sm:$0xf]
    %v1306 = vld [vmem:[%s7 + $0x128] sm:$0xf]
    %v1307 = vld [vmem:[%s7 + $0x12c] sm:$0xf]
    %v1308 = vld [vmem:[%s7 + $0x130] sm:$0xf]
    %v1309 = vld [vmem:[%s7 + $0x134] sm:$0xf]
    %v1310 = vld [vmem:[%s7 + $0x138] sm:$0xf]
    %v1311 = vld [vmem:[%s7 + $0x13c] sm:$0xf]
    %v1312 = vld [vmem:[%s7 + $0x140] sm:$0xf]
    %v1313 = vld [vmem:[%s7 + $0x144] sm:$0xf]
    %v1314 = vld [vmem:[%s7 + $0x148] sm:$0xf]
    %v1315 = vld [vmem:[%s7 + $0x14c] sm:$0xf]
    %v1316 = vld [vmem:[%s7 + $0x150] sm:$0xf]
    %v1317 = vld [vmem:[%s7 + $0x154] sm:$0xf]
    %v1318 = vld [vmem:[%s7 + $0x158] sm:$0xf]
    %v1319 = vld [vmem:[%s7 + $0x15c] sm:$0xf]
    %v1320 = vld [vmem:[%s7 + $0x160] sm:$0xf]
    %v1321 = vld [vmem:[%s7 + $0x164] sm:$0xf]
    %v1322 = vld [vmem:[%s7 + $0x168] sm:$0xf]
    %v1323 = vld [vmem:[%s7 + $0x16c] sm:$0xf]
    %v1324 = vld [vmem:[%s7 + $0x170] sm:$0xf]
    %v1325 = vld [vmem:[%s7 + $0x174] sm:$0xf]
    %v1326 = vld [vmem:[%s7 + $0x178] sm:$0xf]
    %v1327 = vld [vmem:[%s7 + $0x17c] sm:$0xf]
    %v1328 = vld [vmem:[%s7 + $0x180] sm:$0xf]
    %v1329 = vld [vmem:[%s7 + $0x184] sm:$0xf]
    %v1330 = vld [vmem:[%s7 + $0x188] sm:$0xf]
    %v1331 = vld [vmem:[%s7 + $0x18c] sm:$0xf]
    %v1332 = vld [vmem:[%s7 + $0x190] sm:$0xf]
    %v1333 = vld [vmem:[%s7 + $0x194] sm:$0xf]
    %v1334 = vld [vmem:[%s7 + $0x198] sm:$0xf]
    %v1335 = vld [vmem:[%s7 + $0x19c] sm:$0xf]
    %v1336 = vld [vmem:[%s7 + $0x1a0] sm:$0xf]
    %v1337 = vld [vmem:[%s7 + $0x1a4] sm:$0xf]
    %v1338 = vld [vmem:[%s7 + $0x1a8] sm:$0xf]
    %v1339 = vld [vmem:[%s7 + $0x1ac] sm:$0xf]
    %v1340 = vld [vmem:[%s7 + $0x1b0] sm:$0xf]
    %v1341 = vld [vmem:[%s7 + $0x1b4] sm:$0xf]
    %v1342 = vld [vmem:[%s7 + $0x1b8] sm:$0xf]
    %v1343 = vld [vmem:[%s7 + $0x1bc] sm:$0xf]
    %v1344 = vld [vmem:[%s7 + $0x1c0] sm:$0xf]
    %v1345 = vld [vmem:[%s7 + $0x1c4] sm:$0xf]
    %v1346 = vld [vmem:[%s7 + $0x1c8] sm:$0xf]
    %v1347 = vld [vmem:[%s7 + $0x1cc] sm:$0xf]
    %v1348 = vld [vmem:[%s7 + $0x1d0] sm:$0xf]
    %v1349 = vld [vmem:[%s7 + $0x1d4] sm:$0xf]
    %v1350 = vld [vmem:[%s7 + $0x1d8] sm:$0xf]
    %v1351 = vld [vmem:[%s7 + $0x1dc] sm:$0xf]
    %v1352 = vld [vmem:[%s7 + $0x1e0] sm:$0xf]
    %v1353 = vld [vmem:[%s7 + $0x1e4] sm:$0xf]
    %v1354 = vld [vmem:[%s7 + $0x1e8] sm:$0xf]
    %v1355 = vld [vmem:[%s7 + $0x1ec] sm:$0xf]
    %v1356 = vld [vmem:[%s7 + $0x1f0] sm:$0xf]
    %v1357 = vld [vmem:[%s7 + $0x1f4] sm:$0xf]
    %v1358 = vld [vmem:[%s7 + $0x1f8] sm:$0xf]
    %v1359 = vld [vmem:[%s7 + $0x1fc] sm:$0xf]
    %v1360 = vcombine.high %v1230, 0.0
    %v1362 = vunpack.c.l.s4 1983009808
    %v1363 = vunpack.c.0.s8 %v1362
    %v1364 = vlaneseq
    %v1365 = vshrl.u32 %v1364, 7
    %v1366 = vsub.s32 %v1363, %v1365
    %v1367 = vrot.slane %v1230, %v1366
    %v1369 = vunpack.c.l.s4 1983009808
    %v1370 = vunpack.c.0.s8 %v1369
    %v1371 = vlaneseq
    %v1372 = vshrl.u32 %v1371, 7
    %v1373 = vsub.s32 %v1370, %v1372
    %v1374 = vrot.slane %v1360, %v1373
    %v1375 = vcombine.high %v1231, 0.0
    %v1377 = vunpack.c.l.s4 1983009808
    %v1378 = vunpack.c.0.s8 %v1377
    %v1379 = vlaneseq
    %v1380 = vshrl.u32 %v1379, 7
    %v1381 = vsub.s32 %v1378, %v1380
    %v1382 = vrot.slane %v1231, %v1381
    %v1384 = vunpack.c.l.s4 1983009808
    %v1385 = vunpack.c.0.s8 %v1384
    %v1386 = vlaneseq
    %v1387 = vshrl.u32 %v1386, 7
    %v1388 = vsub.s32 %v1385, %v1387
    %v1389 = vrot.slane %v1375, %v1388
    %v1390 = vcombine.low %v1367, %v1382
    %v1391 = vcombine.high %v1367, %v1382
    %v1393 = vunpack.c.l.s4 1934713408
    %v1394 = vunpack.c.0.s8 %v1393
    %v1395 = vlaneseq
    %v1396 = vshrl.u32 %v1395, 7
    %v1397 = vsub.s32 %v1394, %v1396
    %v1398 = vrot.slane %v1390, %v1397
    %v1400 = vunpack.c.l.s4 1934713408
    %v1401 = vunpack.c.0.s8 %v1400
    %v1402 = vlaneseq
    %v1403 = vshrl.u32 %v1402, 7
    %v1404 = vsub.s32 %v1401, %v1403
    %v1405 = vrot.slane %v1391, %v1404
    %v1406 = vcombine.low %v1374, %v1389
    %v1407 = vcombine.high %v1374, %v1389
    %v1409 = vunpack.c.l.s4 1934713408
    %v1410 = vunpack.c.0.s8 %v1409
    %v1411 = vlaneseq
    %v1412 = vshrl.u32 %v1411, 7
    %v1413 = vsub.s32 %v1410, %v1412
    %v1414 = vrot.slane %v1406, %v1413
    %v1416 = vunpack.c.l.s4 1934713408
    %v1417 = vunpack.c.0.s8 %v1416
    %v1418 = vlaneseq
    %v1419 = vshrl.u32 %v1418, 7
    %v1420 = vsub.s32 %v1417, %v1419
    %v1421 = vrot.slane %v1407, %v1420
    %v1422 = vcombine.low %v1398, %v1414
    %v1423 = vcombine.high %v1398, %v1414
    %v1424 = vcombine.low %v1405, %v1421
    %v1425 = vcombine.high %v1405, %v1421
    %v1427 = vcombine.high %v1422, %v1422
    %v1430 = vcombine.high %v1423, %v1423
    %v1433 = vcombine.high %v1424, %v1424
    %v1436 = vcombine.high %v1425, %v1425
    %v1438 = vpack.c.bf16 %v1422, %v1422
    %v1439 = vpack.c.bf16 %v1427, %v1427
    %v1440 = vpack.c.bf16 %v1423, %v1423
    %v1441 = vpack.c.bf16 %v1430, %v1430
    %v1442 = vpack.c.bf16 %v1424, %v1424
    %v1443 = vpack.c.bf16 %v1433, %v1433
    %v1444 = vpack.c.bf16 %v1425, %v1425
    %v1445 = vpack.c.bf16 %v1436, %v1436
    %v1446 = vld [vmem:[%s8] sm:$0x1]
    %v1448 = vlaneseq
    %v1449 = vshrl.u32 %v1448, 7
    %v1450 = vsub.s32 0, %v1449
    %v1451 = vrot.slane %v1446, %v1450
    %v1581 = vunpack.c.l.b16 %v1232
    %v1582 = vunpack.c.l.b16 %v1233
    %v1583 = vunpack.c.l.b16 %v1234
    %v1584 = vunpack.c.l.b16 %v1235
    %v1585 = vunpack.c.l.b16 %v1236
    %v1586 = vunpack.c.l.b16 %v1237
    %v1587 = vunpack.c.l.b16 %v1238
    %v1588 = vunpack.c.l.b16 %v1239
    %v1589 = vunpack.c.l.b16 %v1240
    %v1590 = vunpack.c.l.b16 %v1241
    %v1591 = vunpack.c.l.b16 %v1242
    %v1592 = vunpack.c.l.b16 %v1243
    %v1593 = vunpack.c.l.b16 %v1244
    %v1594 = vunpack.c.l.b16 %v1245
    %v1595 = vunpack.c.l.b16 %v1246
    %v1596 = vunpack.c.l.b16 %v1247
    %v1597 = vunpack.c.l.b16 %v1248
    %v1598 = vunpack.c.l.b16 %v1249
    %v1599 = vunpack.c.l.b16 %v1250
    %v1600 = vunpack.c.l.b16 %v1251
    %v1601 = vunpack.c.l.b16 %v1252
    %v1602 = vunpack.c.l.b16 %v1253
    %v1603 = vunpack.c.l.b16 %v1254
    %v1604 = vunpack.c.l.b16 %v1255
    %v1605 = vunpack.c.l.b16 %v1256
    %v1606 = vunpack.c.l.b16 %v1257
    %v1607 = vunpack.c.l.b16 %v1258
    %v1608 = vunpack.c.l.b16 %v1259
    %v1609 = vunpack.c.l.b16 %v1260
    %v1610 = vunpack.c.l.b16 %v1261
    %v1611 = vunpack.c.l.b16 %v1262
    %v1612 = vunpack.c.l.b16 %v1263
    %v1613 = vunpack.c.l.b16 %v1264
    %v1614 = vunpack.c.l.b16 %v1265
    %v1615 = vunpack.c.l.b16 %v1266
    %v1616 = vunpack.c.l.b16 %v1267
    %v1617 = vunpack.c.l.b16 %v1268
    %v1618 = vunpack.c.l.b16 %v1269
    %v1619 = vunpack.c.l.b16 %v1270
    %v1620 = vunpack.c.l.b16 %v1271
    %v1621 = vunpack.c.l.b16 %v1272
    %v1622 = vunpack.c.l.b16 %v1273
    %v1623 = vunpack.c.l.b16 %v1274
    %v1624 = vunpack.c.l.b16 %v1275
    %v1625 = vunpack.c.l.b16 %v1276
    %v1626 = vunpack.c.l.b16 %v1277
    %v1627 = vunpack.c.l.b16 %v1278
    %v1628 = vunpack.c.l.b16 %v1279
    %v1629 = vunpack.c.l.b16 %v1280
    %v1630 = vunpack.c.l.b16 %v1281
    %v1631 = vunpack.c.l.b16 %v1282
    %v1632 = vunpack.c.l.b16 %v1283
    %v1633 = vunpack.c.l.b16 %v1284
    %v1634 = vunpack.c.l.b16 %v1285
    %v1635 = vunpack.c.l.b16 %v1286
    %v1636 = vunpack.c.l.b16 %v1287
    %v1637 = vunpack.c.l.b16 %v1288
    %v1638 = vunpack.c.l.b16 %v1289
    %v1639 = vunpack.c.l.b16 %v1290
    %v1640 = vunpack.c.l.b16 %v1291
    %v1641 = vunpack.c.l.b16 %v1292
    %v1642 = vunpack.c.l.b16 %v1293
    %v1643 = vunpack.c.l.b16 %v1294
    %v1644 = vunpack.c.l.b16 %v1295
    %v1645 = vunpack.c.l.b16 %v1296
    %v1646 = vunpack.c.l.b16 %v1297
    %v1647 = vunpack.c.l.b16 %v1298
    %v1648 = vunpack.c.l.b16 %v1299
    %v1649 = vunpack.c.l.b16 %v1300
    %v1650 = vunpack.c.l.b16 %v1301
    %v1651 = vunpack.c.l.b16 %v1302
    %v1652 = vunpack.c.l.b16 %v1303
    %v1653 = vunpack.c.l.b16 %v1304
    %v1654 = vunpack.c.l.b16 %v1305
    %v1655 = vunpack.c.l.b16 %v1306
    %v1656 = vunpack.c.l.b16 %v1307
    %v1657 = vunpack.c.l.b16 %v1308
    %v1658 = vunpack.c.l.b16 %v1309
    %v1659 = vunpack.c.l.b16 %v1310
    %v1660 = vunpack.c.l.b16 %v1311
    %v1661 = vunpack.c.l.b16 %v1312
    %v1662 = vunpack.c.l.b16 %v1313
    %v1663 = vunpack.c.l.b16 %v1314
    %v1664 = vunpack.c.l.b16 %v1315
    %v1665 = vunpack.c.l.b16 %v1316
    %v1666 = vunpack.c.l.b16 %v1317
    %v1667 = vunpack.c.l.b16 %v1318
    %v1668 = vunpack.c.l.b16 %v1319
    %v1669 = vunpack.c.l.b16 %v1320
    %v1670 = vunpack.c.l.b16 %v1321
    %v1671 = vunpack.c.l.b16 %v1322
    %v1672 = vunpack.c.l.b16 %v1323
    %v1673 = vunpack.c.l.b16 %v1324
    %v1674 = vunpack.c.l.b16 %v1325
    %v1675 = vunpack.c.l.b16 %v1326
    %v1676 = vunpack.c.l.b16 %v1327
    %v1677 = vunpack.c.l.b16 %v1328
    %v1678 = vunpack.c.l.b16 %v1329
    %v1679 = vunpack.c.l.b16 %v1330
    %v1680 = vunpack.c.l.b16 %v1331
    %v1681 = vunpack.c.l.b16 %v1332
    %v1682 = vunpack.c.l.b16 %v1333
    %v1683 = vunpack.c.l.b16 %v1334
    %v1684 = vunpack.c.l.b16 %v1335
    %v1685 = vunpack.c.l.b16 %v1336
    %v1686 = vunpack.c.l.b16 %v1337
    %v1687 = vunpack.c.l.b16 %v1338
    %v1688 = vunpack.c.l.b16 %v1339
    %v1689 = vunpack.c.l.b16 %v1340
    %v1690 = vunpack.c.l.b16 %v1341
    %v1691 = vunpack.c.l.b16 %v1342
    %v1692 = vunpack.c.l.b16 %v1343
    %v1693 = vunpack.c.l.b16 %v1344
    %v1694 = vunpack.c.l.b16 %v1345
    %v1695 = vunpack.c.l.b16 %v1346
    %v1696 = vunpack.c.l.b16 %v1347
    %v1697 = vunpack.c.l.b16 %v1348
    %v1698 = vunpack.c.l.b16 %v1349
    %v1699 = vunpack.c.l.b16 %v1350
    %v1700 = vunpack.c.l.b16 %v1351
    %v1701 = vunpack.c.l.b16 %v1352
    %v1702 = vunpack.c.l.b16 %v1353
    %v1703 = vunpack.c.l.b16 %v1354
    %v1704 = vunpack.c.l.b16 %v1355
    %v1705 = vunpack.c.l.b16 %v1356
    %v1706 = vunpack.c.l.b16 %v1357
    %v1707 = vunpack.c.l.b16 %v1358
    %v1708 = vunpack.c.l.b16 %v1359
    %v1709 = vpack.c.b16 %v1582, %v1581
    %v1710 = vpack.c.b16 %v1584, %v1583
    %v1711 = vpack.c.b16 %v1586, %v1585
    %v1712 = vpack.c.b16 %v1588, %v1587
    %v1713 = vpack.c.b16 %v1590, %v1589
    %v1714 = vpack.c.b16 %v1592, %v1591
    %v1715 = vpack.c.b16 %v1594, %v1593
    %v1716 = vpack.c.b16 %v1596, %v1595
    %v1717 = vpack.c.b16 %v1598, %v1597
    %v1718 = vpack.c.b16 %v1600, %v1599
    %v1719 = vpack.c.b16 %v1602, %v1601
    %v1720 = vpack.c.b16 %v1604, %v1603
    %v1721 = vpack.c.b16 %v1606, %v1605
    %v1722 = vpack.c.b16 %v1608, %v1607
    %v1723 = vpack.c.b16 %v1610, %v1609
    %v1724 = vpack.c.b16 %v1612, %v1611
    %v1725 = vpack.c.b16 %v1614, %v1613
    %v1726 = vpack.c.b16 %v1616, %v1615
    %v1727 = vpack.c.b16 %v1618, %v1617
    %v1728 = vpack.c.b16 %v1620, %v1619
    %v1729 = vpack.c.b16 %v1622, %v1621
    %v1730 = vpack.c.b16 %v1624, %v1623
    %v1731 = vpack.c.b16 %v1626, %v1625
    %v1732 = vpack.c.b16 %v1628, %v1627
    %v1733 = vpack.c.b16 %v1630, %v1629
    %v1734 = vpack.c.b16 %v1632, %v1631
    %v1735 = vpack.c.b16 %v1634, %v1633
    %v1736 = vpack.c.b16 %v1636, %v1635
    %v1737 = vpack.c.b16 %v1638, %v1637
    %v1738 = vpack.c.b16 %v1640, %v1639
    %v1739 = vpack.c.b16 %v1642, %v1641
    %v1740 = vpack.c.b16 %v1644, %v1643
    %v1741 = vpack.c.b16 %v1646, %v1645
    %v1742 = vpack.c.b16 %v1648, %v1647
    %v1743 = vpack.c.b16 %v1650, %v1649
    %v1744 = vpack.c.b16 %v1652, %v1651
    %v1745 = vpack.c.b16 %v1654, %v1653
    %v1746 = vpack.c.b16 %v1656, %v1655
    %v1747 = vpack.c.b16 %v1658, %v1657
    %v1748 = vpack.c.b16 %v1660, %v1659
    %v1749 = vpack.c.b16 %v1662, %v1661
    %v1750 = vpack.c.b16 %v1664, %v1663
    %v1751 = vpack.c.b16 %v1666, %v1665
    %v1752 = vpack.c.b16 %v1668, %v1667
    %v1753 = vpack.c.b16 %v1670, %v1669
    %v1754 = vpack.c.b16 %v1672, %v1671
    %v1755 = vpack.c.b16 %v1674, %v1673
    %v1756 = vpack.c.b16 %v1676, %v1675
    %v1757 = vpack.c.b16 %v1678, %v1677
    %v1758 = vpack.c.b16 %v1680, %v1679
    %v1759 = vpack.c.b16 %v1682, %v1681
    %v1760 = vpack.c.b16 %v1684, %v1683
    %v1761 = vpack.c.b16 %v1686, %v1685
    %v1762 = vpack.c.b16 %v1688, %v1687
    %v1763 = vpack.c.b16 %v1690, %v1689
    %v1764 = vpack.c.b16 %v1692, %v1691
    %v1765 = vpack.c.b16 %v1694, %v1693
    %v1766 = vpack.c.b16 %v1696, %v1695
    %v1767 = vpack.c.b16 %v1698, %v1697
    %v1768 = vpack.c.b16 %v1700, %v1699
    %v1769 = vpack.c.b16 %v1702, %v1701
    %v1770 = vpack.c.b16 %v1704, %v1703
    %v1771 = vpack.c.b16 %v1706, %v1705
    %v1772 = vpack.c.b16 %v1708, %v1707
    %1837 = vmatprep.subr.bf16.mxu0 0
    %1838 = vmatpush1.bf16.msra.mxu0 %v1709
    %1839 = vmatprep.subr.bf16.mxu0 0
    %1840 = vmatpush1.bf16.msra.mxu0 %v1710
    %1841 = vmatprep.subr.bf16.mxu0 0
    %1842 = vmatpush1.bf16.msra.mxu0 %v1711
    %1843 = vmatprep.subr.bf16.mxu0 0
    %1844 = vmatpush1.bf16.msra.mxu0 %v1712
    %1845 = vmatprep.subr.bf16.mxu0 0
    %1846 = vmatpush1.bf16.msra.mxu0 %v1713
    %1847 = vmatprep.subr.bf16.mxu0 0
    %1848 = vmatpush1.bf16.msra.mxu0 %v1714
    %1849 = vmatprep.subr.bf16.mxu0 0
    %1850 = vmatpush1.bf16.msra.mxu0 %v1715
    %1851 = vmatprep.subr.bf16.mxu0 0
    %1852 = vmatpush1.bf16.msra.mxu0 %v1716
    %1853 = vmatprep.subr.bf16.mxu0 0
    %1854 = vmatpush1.bf16.msra.mxu0 %v1717
    %1855 = vmatprep.subr.bf16.mxu0 0
    %1856 = vmatpush1.bf16.msra.mxu0 %v1718
    %1857 = vmatprep.subr.bf16.mxu0 0
    %1858 = vmatpush1.bf16.msra.mxu0 %v1719
    %1859 = vmatprep.subr.bf16.mxu0 0
    %1860 = vmatpush1.bf16.msra.mxu0 %v1720
    %1861 = vmatprep.subr.bf16.mxu0 0
    %1862 = vmatpush1.bf16.msra.mxu0 %v1721
    %1863 = vmatprep.subr.bf16.mxu0 0
    %1864 = vmatpush1.bf16.msra.mxu0 %v1722
    %1865 = vmatprep.subr.bf16.mxu0 0
    %1866 = vmatpush1.bf16.msra.mxu0 %v1723
    %1867 = vmatprep.subr.bf16.mxu0 0
    %1868 = vmatpush1.bf16.msra.mxu0 %v1724
    %1869 = vmatprep.mubr.bf16.mxu0 %v1439
    %1870 = vmatmul.mubr.bf16.gmra.mrb[0].mxu0 %v1438
    %v1871 = vpop.f32.mrb[0].mxu0
    %v1872 = vadd.f32 %v1451, %v1871
    %v1873 = vpop.f32.mrb[0].mxu0
    %v1874 = vpop.f32.mrb[0].mxu0
    %v1875 = vpop.f32.mrb[0].mxu0
    %1876 = vdwg.mxu0
    %1877 = vmatprep.subr.bf16.mxu0 0
    %1878 = vmatpush1.bf16.msra.mxu0 %v1725
    %1879 = vmatprep.subr.bf16.mxu0 0
    %1880 = vmatpush1.bf16.msra.mxu0 %v1726
    %1881 = vmatprep.subr.bf16.mxu0 0
    %1882 = vmatpush1.bf16.msra.mxu0 %v1727
    %1883 = vmatprep.subr.bf16.mxu0 0
    %1884 = vmatpush1.bf16.msra.mxu0 %v1728
    %1885 = vmatprep.subr.bf16.mxu0 0
    %1886 = vmatpush1.bf16.msra.mxu0 %v1729
    %1887 = vmatprep.subr.bf16.mxu0 0
    %1888 = vmatpush1.bf16.msra.mxu0 %v1730
    %1889 = vmatprep.subr.bf16.mxu0 0
    %1890 = vmatpush1.bf16.msra.mxu0 %v1731
    %1891 = vmatprep.subr.bf16.mxu0 0
    %1892 = vmatpush1.bf16.msra.mxu0 %v1732
    %1893 = vmatprep.subr.bf16.mxu0 0
    %1894 = vmatpush1.bf16.msra.mxu0 %v1733
    %1895 = vmatprep.subr.bf16.mxu0 0
    %1896 = vmatpush1.bf16.msra.mxu0 %v1734
    %1897 = vmatprep.subr.bf16.mxu0 0
    %1898 = vmatpush1.bf16.msra.mxu0 %v1735
    %1899 = vmatprep.subr.bf16.mxu0 0
    %1900 = vmatpush1.bf16.msra.mxu0 %v1736
    %1901 = vmatprep.subr.bf16.mxu0 0
    %1902 = vmatpush1.bf16.msra.mxu0 %v1737
    %1903 = vmatprep.subr.bf16.mxu0 0
    %1904 = vmatpush1.bf16.msra.mxu0 %v1738
    %1905 = vmatprep.subr.bf16.mxu0 0
    %1906 = vmatpush1.bf16.msra.mxu0 %v1739
    %1907 = vmatprep.subr.bf16.mxu0 0
    %1908 = vmatpush1.bf16.msra.mxu0 %v1740
    %1909 = vmatprep.mubr.bf16.mxu0 %v1441
    %1910 = vmatmul.mubr.bf16.gmra.mrb[0].mxu0 %v1440
    %v1911 = vpop.f32.mrb[0].mxu0
    %v1912 = vadd.f32 %v1872, %v1911
    %v1913 = vpop.f32.mrb[0].mxu0
    %v1914 = vpop.f32.mrb[0].mxu0
    %v1915 = vpop.f32.mrb[0].mxu0
    %1916 = vdwg.mxu0
    %1917 = vmatprep.subr.bf16.mxu0 0
    %1918 = vmatpush1.bf16.msra.mxu0 %v1741
    %1919 = vmatprep.subr.bf16.mxu0 0
    %1920 = vmatpush1.bf16.msra.mxu0 %v1742
    %1921 = vmatprep.subr.bf16.mxu0 0
    %1922 = vmatpush1.bf16.msra.mxu0 %v1743
    %1923 = vmatprep.subr.bf16.mxu0 0
    %1924 = vmatpush1.bf16.msra.mxu0 %v1744
    %1925 = vmatprep.subr.bf16.mxu0 0
    %1926 = vmatpush1.bf16.msra.mxu0 %v1745
    %1927 = vmatprep.subr.bf16.mxu0 0
    %1928 = vmatpush1.bf16.msra.mxu0 %v1746
    %1929 = vmatprep.subr.bf16.mxu0 0
    %1930 = vmatpush1.bf16.msra.mxu0 %v1747
    %1931 = vmatprep.subr.bf16.mxu0 0
    %1932 = vmatpush1.bf16.msra.mxu0 %v1748
    %1933 = vmatprep.subr.bf16.mxu0 0
    %1934 = vmatpush1.bf16.msra.mxu0 %v1749
    %1935 = vmatprep.subr.bf16.mxu0 0
    %1936 = vmatpush1.bf16.msra.mxu0 %v1750
    %1937 = vmatprep.subr.bf16.mxu0 0
    %1938 = vmatpush1.bf16.msra.mxu0 %v1751
    %1939 = vmatprep.subr.bf16.mxu0 0
    %1940 = vmatpush1.bf16.msra.mxu0 %v1752
    %1941 = vmatprep.subr.bf16.mxu0 0
    %1942 = vmatpush1.bf16.msra.mxu0 %v1753
    %1943 = vmatprep.subr.bf16.mxu0 0
    %1944 = vmatpush1.bf16.msra.mxu0 %v1754
    %1945 = vmatprep.subr.bf16.mxu0 0
    %1946 = vmatpush1.bf16.msra.mxu0 %v1755
    %1947 = vmatprep.subr.bf16.mxu0 0
    %1948 = vmatpush1.bf16.msra.mxu0 %v1756
    %1949 = vmatprep.mubr.bf16.mxu0 %v1443
    %1950 = vmatmul.mubr.bf16.gmra.mrb[0].mxu0 %v1442
    %v1951 = vpop.f32.mrb[0].mxu0
    %v1952 = vadd.f32 %v1912, %v1951
    %v1953 = vpop.f32.mrb[0].mxu0
    %v1954 = vpop.f32.mrb[0].mxu0
    %v1955 = vpop.f32.mrb[0].mxu0
    %1956 = vdwg.mxu0
    %1957 = vmatprep.subr.bf16.mxu0 0
    %1958 = vmatpush1.bf16.msra.mxu0 %v1757
    %1959 = vmatprep.subr.bf16.mxu0 0
    %1960 = vmatpush1.bf16.msra.mxu0 %v1758
    %1961 = vmatprep.subr.bf16.mxu0 0
    %1962 = vmatpush1.bf16.msra.mxu0 %v1759
    %1963 = vmatprep.subr.bf16.mxu0 0
    %1964 = vmatpush1.bf16.msra.mxu0 %v1760
    %1965 = vmatprep.subr.bf16.mxu0 0
    %1966 = vmatpush1.bf16.msra.mxu0 %v1761
    %1967 = vmatprep.subr.bf16.mxu0 0
    %1968 = vmatpush1.bf16.msra.mxu0 %v1762
    %1969 = vmatprep.subr.bf16.mxu0 0
    %1970 = vmatpush1.bf16.msra.mxu0 %v1763
    %1971 = vmatprep.subr.bf16.mxu0 0
    %1972 = vmatpush1.bf16.msra.mxu0 %v1764
    %1973 = vmatprep.subr.bf16.mxu0 0
    %1974 = vmatpush1.bf16.msra.mxu0 %v1765
    %1975 = vmatprep.subr.bf16.mxu0 0
    %1976 = vmatpush1.bf16.msra.mxu0 %v1766
    %1977 = vmatprep.subr.bf16.mxu0 0
    %1978 = vmatpush1.bf16.msra.mxu0 %v1767
    %1979 = vmatprep.subr.bf16.mxu0 0
    %1980 = vmatpush1.bf16.msra.mxu0 %v1768
    %1981 = vmatprep.subr.bf16.mxu0 0
    %1982 = vmatpush1.bf16.msra.mxu0 %v1769
    %1983 = vmatprep.subr.bf16.mxu0 0
    %1984 = vmatpush1.bf16.msra.mxu0 %v1770
    %1985 = vmatprep.subr.bf16.mxu0 0
    %1986 = vmatpush1.bf16.msra.mxu0 %v1771
    %1987 = vmatprep.subr.bf16.mxu0 0
    %1988 = vmatpush1.bf16.msra.mxu0 %v1772
    %1989 = vmatprep.mubr.bf16.mxu0 %v1445
    %1990 = vmatmul.mubr.bf16.gmra.mrb[0].mxu0 %v1444
    %v1991 = vpop.f32.mrb[0].mxu0
    %v1992 = vadd.f32 %v1952, %v1991
    %v1993 = vpop.f32.mrb[0].mxu0
    %v1994 = vpop.f32.mrb[0].mxu0
    %v1995 = vpop.f32.mrb[0].mxu0
    %1996 = vdwg.mxu0
    %vm1997 = vcmask 9216
    %v1998 = vsel %vm1997, %v1992, -inf
    %1999 = vmax.xlane.f32.xlu0 %v1998
    %v2000 = vpop.xlane.xlu0 %1999
    %v2001 = vsub.f32 %v1992, %v2000
    %v2002 = vmul.f32 %v2001, 1.442695
    %v2003 = vpow.pop %v2002
    %v2004 = vsel %vm1997, %v2003, 0.0
    %2005 = vadd.xlane.f32.xlu0 %v2004
    %v2006 = vpop.xlane.xlu0 %2005
    %v2007 = vrcp.pop %v2006
    %v2008 = vmul.f32 %v2003, %v2007
    %2009 = vst.msk [vmem:[#allocation2] sm:$0x3] %vm1997, %v2008
    // Predicated region
    $region38: #{tpu_custom_call.1} parent=1 // pred_check
      _
    $region39: #{tpu_custom_call.1} parent=1 // pred_check_branch
      %2011 = sbr.rel (0) target = $region41
    $region40: #{tpu_custom_call.1} parent=1 // pred_region
      %s2013 = ssub.s32 32, 32
      %2014 = vsyncadd [#allocation3], %s2013
      %s2016 = sshll.u32 [#allocation2], 4
      %s2017 = int_to_ptr.vmem [resolvable:$true] %s2016
      %2019 = dma.vmem_to_hbm [thread:$0]  %s2017, 32, %s9, [#allocation3]
    $region41: #{tpu_custom_call.1} parent=1 // pred_fallthru
      _
    // Predicated region
    $region42: #{tpu_custom_call.1} parent=1 // pred_check
      _
    $region43: #{tpu_custom_call.1} parent=1 // pred_check_branch
      %2021 = sbr.rel (0) target = $region45
    $region44: #{tpu_custom_call.1} parent=1 // pred_region
      %2022 = dma.done [#allocation3], 32
    $region45: #{tpu_custom_call.1} parent=1 // pred_fallthru
      _
    %2023 = vsyncpa [#allocation3], 1

</llo_original>
